<compile_context>
chip_gen: v5e
topology: v5e:2x2
jax: 0.10.0
libtpu: 0.0.40
codegen_flags: <defaults>
</compile_context>

<pallas_src>
import functools
import numpy as np
import jax
import jax.numpy as jnp
from jax.experimental import pallas as pl
from jax.experimental.pallas import tpu as pltpu


# ----------------------------- glue (reindexing) -----------------------------

def window_partition(x, ws):
    B, H, W, C = x.shape
    x = x.reshape(B, H // ws, ws, W // ws, ws, C)
    x = x.transpose(0, 1, 3, 2, 4, 5)
    return x.reshape(-1, ws, ws, C)


def window_reverse(windows, ws, H, W):
    B = windows.shape[0] // ((H // ws) * (W // ws))
    x = windows.reshape(B, H // ws, W // ws, ws, ws, -1)
    x = x.transpose(0, 1, 3, 2, 4, 5)
    return x.reshape(B, H, W, -1)


def make_relative_position_index(ws):
    coords = np.stack(np.meshgrid(np.arange(ws), np.arange(ws), indexing="ij"))
    coords = coords.reshape(2, -1)
    rel = coords[:, :, None] - coords[:, None, :]
    rel = rel.transpose(1, 2, 0)
    rel[:, :, 0] += ws - 1
    rel[:, :, 1] += ws - 1
    rel[:, :, 0] *= 2 * ws - 1
    return rel.sum(-1)                                           # (N, N)


def make_shift_mask(H, W, ws, shift):
    """Replicates the PyTorch attn_mask construction. Returns (nW, N, N) float32."""
    N = ws * ws
    if shift == 0:
        return np.zeros((1, N, N), np.float32)
    img_mask = np.zeros((1, H, W, 1), np.float32)
    h_slices = (slice(0, -ws), slice(-ws, -shift), slice(-shift, None))
    w_slices = (slice(0, -ws), slice(-ws, -shift), slice(-shift, None))
    cnt = 0
    for h in h_slices:
        for w in w_slices:
            img_mask[:, h, w, :] = cnt
            cnt += 1
    mw = np.asarray(window_partition(jnp.asarray(img_mask), ws)).reshape(-1, N)
    attn_mask = mw[:, None, :] - mw[:, :, None]
    return np.where(attn_mask != 0, -100.0, 0.0).astype(np.float32)


# --------------------------- generation-aware config ---------------------------

def _generation_config():
    """(vmem_limit_bytes, target_rows_per_step), derived from VMEM capacity.
    v5e/v6e: 128 MiB VMEM -> spend it (96 MiB limit, ~512-row slabs).
    v7x (or unknown): 64 MiB/TC -> stay tight (48 MiB limit, ~256-row slabs).
    (On v5e, 128-row multiples already fill the 4x128x128 MXU; 256/512 rows still
    only cost VMEM it has plenty of, so one bucket per capacity class is enough.)"""
    vmem_limit, target_rows = 48 * 1024 * 1024, 256
    try:
        cap = pltpu.get_tpu_info().vmem_capacity_bytes
        if cap >= 100 * 1024 * 1024:
            vmem_limit, target_rows = 96 * 1024 * 1024, 512
    except Exception:
        pass
    return vmem_limit, target_rows


def _choose_windows_per_step(num_windows, windows_per_image, tokens_per_window,
                             target_rows):
    """Windows per grid step: multiple of nW (mask periodicity, whole images per
    tile) that divides the total window count, targeting ~target_rows matmul rows
    per step while keeping >=2 grid steps per TensorCore (>=4 total, v7x has 2 TCs)
    whenever possible."""
    imgs = num_windows // windows_per_image
    rows_per_image = windows_per_image * tokens_per_window
    k = max(1, target_rows // max(1, rows_per_image))      # images per grid step
    k = min(k, imgs)
    min_steps = 4 if imgs >= 4 else (2 if imgs >= 2 else 1)
    k = max(1, min(k, imgs // min_steps))
    while imgs % k:
        k -= 1
    return k * windows_per_image


# ------------------------------- Pallas kernel ---------------------------------

def _window_attn_pallas(xw, gamma, beta, wqkv, bqkv, rel_bias, attn_mask,
                        wproj, bproj, *, num_heads):
    BW, N, C = xw.shape
    nW = attn_mask.shape[0]
    assert C % num_heads == 0
    assert BW % nW == 0
    assert N % 8 == 0, "pad tokens-per-window to a multiple of 8 (mask=-100 pads)"
    head_dim = C // num_heads
    scale = head_dim ** -0.5

    vmem_limit, target_rows = _generation_config()

    TILE_W = _choose_windows_per_step(BW, nW, N, target_rows)
    M = TILE_W * N
    num_tiles = BW // TILE_W
    # (8,128) block constraint: when tiling, M must be a multiple of 8.
    if num_tiles > 1 and (M % 8 != 0):
        TILE_W = BW
        M = TILE_W * N
        num_tiles = 1
    assert TILE_W % nW == 0 and BW % TILE_W == 0
    k_imgs = TILE_W // nW                                   # whole images per tile

    # Fold the 1/sqrt(head_dim) scale into the Q columns of Wqkv / bqkv (removes a
    # VPU multiply per head per window inside the kernel).
    col_scale = jnp.concatenate(
        [jnp.full((C,), scale, jnp.float32), jnp.ones((2 * C,), jnp.float32)])
    wqkv_f = (wqkv.astype(jnp.float32) * col_scale[None, :]).astype(wqkv.dtype)
    bqkv_f = (bqkv.astype(jnp.float32) * col_scale[None, :]).astype(bqkv.dtype)

    # Combined relative-position bias + shift mask, NOT pre-tiled over the window
    # tile: (num_heads, nW, N, N).  Grid-invariant -> DMA'd once, single-buffered.
    # (Could be stored bf16 to halve its VMEM at the cost of one cast on add.)
    bias_mask = (rel_bias.astype(jnp.float32)[:, None, :, :]
                 + attn_mask.astype(jnp.float32)[None])

    x_flat = xw.reshape(BW * N, C)

    def kernel(x_ref, g_ref, b_ref, wqkv_ref, bqkv_ref, bm_ref, wp_ref, bp_ref,
               o_ref, attn_ref):
        # ---- LayerNorm over C (f32 math, eps = 1e-5) --------------------------
        x = x_ref[...].astype(jnp.float32)                       # (M, C)
        mu = jnp.mean(x, axis=-1, keepdims=True)
        var = jnp.mean(jnp.square(x - mu), axis=-1, keepdims=True)
        xn = (x - mu) * jax.lax.rsqrt(var + 1e-5)
        xn = xn * g_ref[0].astype(jnp.float32) + b_ref[0].astype(jnp.float32)

        # ---- fused qkv projection: one (M, C) @ (C, 3C) MXU matmul ------------
        qkv = jnp.dot(xn.astype(wqkv_ref.dtype), wqkv_ref[...],
                      preferred_element_type=jnp.float32)
        qkv = qkv + bqkv_ref[0].astype(jnp.float32)              # (M, 3C)

        # ---- per-head attention; outputs assembled into (M, C) scratch --------
        for h in range(num_heads):                               # static unroll
            lo = h * head_dim
            q = qkv[:, lo:lo + head_dim].reshape(TILE_W, N, head_dim)
            k = qkv[:, C + lo:C + lo + head_dim].reshape(TILE_W, N, head_dim)
            v = qkv[:, 2 * C + lo:2 * C + lo + head_dim].reshape(TILE_W, N, head_dim)

            # batched q·kᵀ over the window axis, contraction on last dims
            s = jax.lax.dot_general(q, k, (((2,), (2,)), ((0,), (0,))),
                                    preferred_element_type=jnp.float32)
            # rel-bias + shift mask, broadcast over the k_imgs images in this tile
            s = (s.reshape(k_imgs, nW, N, N) + bm_ref[h]).reshape(TILE_W, N, N)
            s = s - jnp.max(s, axis=-1, keepdims=True)
            p = jnp.exp(s)
            p = p * pl.reciprocal(jnp.sum(p, axis=-1, keepdims=True), approx=True)

            o_h = jax.lax.dot_general(p, v, (((2,), (1,)), ((0,), (0,))),
                                      preferred_element_type=jnp.float32)
            attn_ref[:, lo:lo + head_dim] = o_h.reshape(M, head_dim)

        # ---- single (M, C) @ (C, C) output projection (full-K MXU matmul) -----
        out = jnp.dot(attn_ref[...].astype(wp_ref.dtype), wp_ref[...],
                      preferred_element_type=jnp.float32)
        o_ref[...] = (out + bp_ref[0].astype(jnp.float32)).astype(o_ref.dtype)

    # Grid-invariant operands: constant index_map + single-buffered (Buffered(1)),
    # so weights occupy 1x (not 2x) their size in VMEM.
    def const_spec(shape):
        n = len(shape)
        return pl.BlockSpec(shape, lambda i: (0,) * n, pipeline_mode=pl.Buffered(1))

    out_flat = pl.pallas_call(
        kernel,
        out_shape=jax.ShapeDtypeStruct((BW * N, C), xw.dtype),
        grid_spec=pltpu.PrefetchScalarGridSpec(
            num_scalar_prefetch=0,
            grid=(num_tiles,),
            in_specs=[
                pl.BlockSpec((M, C), lambda i: (i, 0)),            # x tile (pipelined)
                const_spec((1, C)),                                # gamma
                const_spec((1, C)),                                # beta
                const_spec((C, 3 * C)),                            # Wqkv (scaled)
                const_spec((1, 3 * C)),                            # bqkv (scaled)
                const_spec((num_heads, nW, N, N)),                 # bias + mask
                const_spec((C, C)),                                # Wproj
                const_spec((1, C)),                                # bproj
            ],
            out_specs=pl.BlockSpec((M, C), lambda i: (i, 0)),
            scratch_shapes=[pltpu.VMEM((M, C), jnp.float32)],      # per-head assembly
        ),
        compiler_params=pltpu.CompilerParams(
            dimension_semantics=("parallel",),
            vmem_limit_bytes=vmem_limit,
        ),
    )(x_flat, gamma, beta, wqkv_f, bqkv_f, bias_mask, wproj, bproj)

    return out_flat.reshape(BW, N, C)


# ----------------------------- full block forward ------------------------------

def window_attention_block(x, params, *, H, W, window_size, shift_size, num_heads):
    B, L, C = x.shape
    assert L == H * W
    x = x.reshape(B, H, W, C)
    if shift_size > 0:
        x = jnp.roll(x, shift=(-shift_size, -shift_size), axis=(1, 2))
    xw = window_partition(x, window_size)                        # (B*nW, ws, ws, C)
    N = window_size * window_size
    xw = xw.reshape(-1, N, C)

    attn_w = _window_attn_pallas(
        xw, params["gamma"], params["beta"], params["wqkv"], params["bqkv"],
        params["rel_bias"], params["attn_mask"], params["wproj"], params["bproj"],
        num_heads=num_heads)

    attn_w = attn_w.reshape(-1, window_size, window_size, C)
    x = window_reverse(attn_w, window_size, H, W)
    if shift_size > 0:
        x = jnp.roll(x, shift=(shift_size, shift_size), axis=(1, 2))
    # NOTE: reference forward computes `shortcut` but never adds it; drop_path is Identity.
    return x.reshape(B, H * W, C)


# ------------------------------ pure-JAX reference ------------------------------

def reference_block(x, params, *, H, W, window_size, shift_size, num_heads):
    B, L, C = x.shape
    head_dim = C // num_heads
    scale = head_dim ** -0.5
    N = window_size * window_size
    xn = x.reshape(B, H, W, C)
    mu = jnp.mean(xn, -1, keepdims=True)
    var = jnp.mean(jnp.square(xn - mu), -1, keepdims=True)
    xn = (xn - mu) * jax.lax.rsqrt(var + 1e-5) * params["gamma"][0] + params["beta"][0]
    if shift_size > 0:
        xn = jnp.roll(xn, (-shift_size, -shift_size), axis=(1, 2))
    xw = window_partition(xn, window_size).reshape(-1, N, C)
    qkv = xw @ params["wqkv"] + params["bqkv"][0]
    q, k, v = (qkv[..., i * C:(i + 1) * C].reshape(-1, N, num_heads, head_dim)
               .transpose(0, 2, 1, 3) for i in range(3))
    attn = (q * scale) @ k.transpose(0, 1, 3, 2) + params["rel_bias"][None]
    nW = params["attn_mask"].shape[0]
    attn = attn.reshape(-1, nW, num_heads, N, N) + params["attn_mask"][None, :, None]
    attn = jax.nn.softmax(attn.reshape(-1, num_heads, N, N), axis=-1)
    out = (attn @ v).transpose(0, 2, 1, 3).reshape(-1, N, C)
    out = out @ params["wproj"] + params["bproj"][0]
    out = window_reverse(out.reshape(-1, window_size, window_size, C), window_size, H, W)
    if shift_size > 0:
        out = jnp.roll(out, (shift_size, shift_size), axis=(1, 2))
    return out.reshape(B, H * W, C)


# ------------------------------------ main -------------------------------------

if __name__ == "__main__":
    B, H, W = 2, 8, 8
    C, num_heads = 32, 4
    window_size, shift_size = 4, 2          # shifted-window branch exercises the mask
    N = window_size * window_size

    key = jax.random.PRNGKey(0)
    ks = jax.random.split(key, 8)
    x = jax.random.normal(ks[0], (B, H * W, C), jnp.float32)

    # Deterministic synthetic parameters (shapes per module __init__)
    table = jax.random.normal(ks[1], ((2 * window_size - 1) ** 2, num_heads), jnp.float32) * 0.02
    rel_idx = make_relative_position_index(window_size)          # (N, N)
    rel_bias = table[rel_idx.reshape(-1)].reshape(N, N, num_heads).transpose(2, 0, 1)  # (nH,N,N)

    params = dict(
        gamma=jnp.ones((1, C), jnp.float32),
        beta=jnp.zeros((1, C), jnp.float32),
        wqkv=jax.random.normal(ks[2], (C, 3 * C), jnp.float32) * 0.02,
        bqkv=(jax.random.normal(ks[3], (1, 3 * C), jnp.float32) * 0.02),
        wproj=jax.random.normal(ks[4], (C, C), jnp.float32) * 0.02,
        bproj=(jax.random.normal(ks[5], (1, C), jnp.float32) * 0.02),
        rel_bias=rel_bias,
        attn_mask=jnp.asarray(make_shift_mask(H, W, window_size, shift_size)),
    )

    fwd = functools.partial(window_attention_block, H=H, W=W, window_size=window_size,
                            shift_size=shift_size, num_heads=num_heads)
    out = jax.jit(lambda a: fwd(a, params))(x)
    out = jax.block_until_ready(out)

    ref = reference_block(x, params, H=H, W=W, window_size=window_size,
                          shift_size=shift_size, num_heads=num_heads)
    assert out.shape == (B, H * W, C)
    # Tolerance is slightly loose vs. exact f32: the kernel uses the EUP approximate
    # reciprocal for the softmax normalization and folds the q-scale into Wqkv, both
    # of which introduce tiny (<1e-3) rounding drift.
    np.testing.assert_allclose(np.asarray(out), np.asarray(ref), rtol=1e-2, atol=2e-3)
    print("KERNEL_OK")
</pallas_src>

<mosaic_0001>
module attributes {stable_mosaic.version = 11 : i64} {
  func.func @kernel(%arg0: i32, %arg1: memref<64x32xf32, #tpu.memory_space<vmem>>, %arg2: memref<1x32xf32, #tpu.memory_space<vmem>>, %arg3: memref<1x32xf32, #tpu.memory_space<vmem>>, %arg4: memref<32x96xf32, #tpu.memory_space<vmem>>, %arg5: memref<1x96xf32, #tpu.memory_space<vmem>>, %arg6: memref<4x4x16x16xf32, #tpu.memory_space<vmem>>, %arg7: memref<32x32xf32, #tpu.memory_space<vmem>>, %arg8: memref<1x32xf32, #tpu.memory_space<vmem>>, %arg9: memref<64x32xf32, #tpu.memory_space<vmem>>, %arg10: memref<64x32xf32, #tpu.memory_space<vmem>>) attributes {dimension_semantics = [#tpu.dimension_semantics<parallel>], iteration_bounds = array<i64: 2>, scalar_prefetch = 0 : i64, scratch_operands = 1 : i64, tpu.core_type = #tpu.core_type<tc>, window_params = [{transform_indices = @transform_0, window_bounds = array<i64: 64, 32>}, {pipeline_mode = #tpu.pipeline_mode<synchronous>, transform_indices = @transform_1, window_bounds = array<i64: 1, 32>}, {pipeline_mode = #tpu.pipeline_mode<synchronous>, transform_indices = @transform_2, window_bounds = array<i64: 1, 32>}, {pipeline_mode = #tpu.pipeline_mode<synchronous>, transform_indices = @transform_3, window_bounds = array<i64: 32, 96>}, {pipeline_mode = #tpu.pipeline_mode<synchronous>, transform_indices = @transform_4, window_bounds = array<i64: 1, 96>}, {pipeline_mode = #tpu.pipeline_mode<synchronous>, transform_indices = @transform_5, window_bounds = array<i64: 4, 4, 16, 16>}, {pipeline_mode = #tpu.pipeline_mode<synchronous>, transform_indices = @transform_6, window_bounds = array<i64: 32, 32>}, {pipeline_mode = #tpu.pipeline_mode<synchronous>, transform_indices = @transform_7, window_bounds = array<i64: 1, 32>}, {transform_indices = @transform_8, window_bounds = array<i64: 64, 32>}]} {
    %c0 = arith.constant 0 : index
    %c0_0 = arith.constant 0 : index
    %0 = vector.load %arg1[%c0, %c0_0] : memref<64x32xf32, #tpu.memory_space<vmem>>, vector<64x32xf32>
    %cst = arith.constant dense<0.000000e+00> : vector<64xf32>
    %1 = vector.multi_reduction <add>, %0, %cst [1] : vector<64x32xf32> to vector<64xf32>
    %2 = vector.shape_cast %1 : vector<64xf32> to vector<64x1xf32>
    %cst_1 = arith.constant 3.200000e+01 : f32
    %3 = vector.broadcast %cst_1 : f32 to vector<64x1xf32>
    %4 = arith.divf %2, %3 : vector<64x1xf32>
    %5 = vector.broadcast %4 : vector<64x1xf32> to vector<64x32xf32>
    %6 = arith.subf %0, %5 : vector<64x32xf32>
    %7 = arith.mulf %6, %6 : vector<64x32xf32>
    %cst_2 = arith.constant dense<0.000000e+00> : vector<64xf32>
    %8 = vector.multi_reduction <add>, %7, %cst_2 [1] : vector<64x32xf32> to vector<64xf32>
    %9 = vector.shape_cast %8 : vector<64xf32> to vector<64x1xf32>
    %cst_3 = arith.constant 3.200000e+01 : f32
    %10 = vector.broadcast %cst_3 : f32 to vector<64x1xf32>
    %11 = arith.divf %9, %10 : vector<64x1xf32>
    %12 = vector.broadcast %4 : vector<64x1xf32> to vector<64x32xf32>
    %13 = arith.subf %0, %12 : vector<64x32xf32>
    %cst_4 = arith.constant 9.99999974E-6 : f32
    %14 = vector.broadcast %cst_4 : f32 to vector<64x1xf32>
    %15 = arith.addf %11, %14 : vector<64x1xf32>
    %16 = math.rsqrt %15 : vector<64x1xf32>
    %17 = vector.broadcast %16 : vector<64x1xf32> to vector<64x32xf32>
    %18 = arith.mulf %13, %17 : vector<64x32xf32>
    %c0_5 = arith.constant 0 : index
    %c0_6 = arith.constant 0 : index
    %19 = vector.load %arg2[%c0_5, %c0_6] : memref<1x32xf32, #tpu.memory_space<vmem>>, vector<1x32xf32>
    %20 = vector.shape_cast %19 : vector<1x32xf32> to vector<32xf32>
    %21 = vector.shape_cast %20 : vector<32xf32> to vector<1x32xf32>
    %22 = vector.broadcast %21 : vector<1x32xf32> to vector<64x32xf32>
    %23 = arith.mulf %18, %22 : vector<64x32xf32>
    %c0_7 = arith.constant 0 : index
    %c0_8 = arith.constant 0 : index
    %24 = vector.load %arg3[%c0_7, %c0_8] : memref<1x32xf32, #tpu.memory_space<vmem>>, vector<1x32xf32>
    %25 = vector.shape_cast %24 : vector<1x32xf32> to vector<32xf32>
    %26 = vector.shape_cast %25 : vector<32xf32> to vector<1x32xf32>
    %27 = vector.broadcast %26 : vector<1x32xf32> to vector<64x32xf32>
    %28 = arith.addf %23, %27 : vector<64x32xf32>
    %c0_9 = arith.constant 0 : index
    %c0_10 = arith.constant 0 : index
    %29 = vector.load %arg4[%c0_9, %c0_10] : memref<32x96xf32, #tpu.memory_space<vmem>>, vector<32x96xf32>
    %cst_11 = arith.constant dense<0.000000e+00> : vector<64x96xf32>
    %30 = tpu.matmul %28, %29, %cst_11 {dimension_numbers = #tpu.dot_dimension_numbers<[1], [0], [0], [1], [0, 0, 1, 1], [], []>} : vector<64x32xf32>, vector<32x96xf32>, vector<64x96xf32> -> vector<64x96xf32>
    %c0_12 = arith.constant 0 : index
    %c0_13 = arith.constant 0 : index
    %31 = vector.load %arg5[%c0_12, %c0_13] : memref<1x96xf32, #tpu.memory_space<vmem>>, vector<1x96xf32>
    %32 = vector.shape_cast %31 : vector<1x96xf32> to vector<96xf32>
    %33 = vector.shape_cast %32 : vector<96xf32> to vector<1x96xf32>
    %34 = vector.broadcast %33 : vector<1x96xf32> to vector<64x96xf32>
    %35 = arith.addf %30, %34 : vector<64x96xf32>
    %36 = vector.extract_strided_slice %35 {offsets = [0, 0], sizes = [64, 8], strides = [1, 1]} : vector<64x96xf32> to vector<64x8xf32>
    %37 = vector.shape_cast %36 : vector<64x8xf32> to vector<4x16x8xf32>
    %38 = vector.extract_strided_slice %35 {offsets = [0, 32], sizes = [64, 8], strides = [1, 1]} : vector<64x96xf32> to vector<64x8xf32>
    %39 = vector.shape_cast %38 : vector<64x8xf32> to vector<4x16x8xf32>
    %40 = vector.extract_strided_slice %35 {offsets = [0, 64], sizes = [64, 8], strides = [1, 1]} : vector<64x96xf32> to vector<64x8xf32>
    %41 = vector.shape_cast %40 : vector<64x8xf32> to vector<4x16x8xf32>
    %cst_14 = arith.constant dense<0.000000e+00> : vector<4x16x16xf32>
    %42 = tpu.matmul %37, %39, %cst_14 {dimension_numbers = #tpu.dot_dimension_numbers<[2], [2], [1], [1], [0, 0, 0, 1, 1, 1], [0], [0]>} : vector<4x16x8xf32>, vector<4x16x8xf32>, vector<4x16x16xf32> -> vector<4x16x16xf32>
    %43 = vector.shape_cast %42 : vector<4x16x16xf32> to vector<1x4x16x16xf32>
    %c0_15 = arith.constant 0 : index
    %c0_16 = arith.constant 0 : index
    %c0_17 = arith.constant 0 : index
    %c0_18 = arith.constant 0 : index
    %44 = vector.load %arg6[%c0_15, %c0_16, %c0_17, %c0_18] : memref<4x4x16x16xf32, #tpu.memory_space<vmem>>, vector<1x4x16x16xf32>
    %45 = vector.shape_cast %44 : vector<1x4x16x16xf32> to vector<4x16x16xf32>
    %46 = vector.shape_cast %45 : vector<4x16x16xf32> to vector<1x4x16x16xf32>
    %47 = arith.addf %43, %46 : vector<1x4x16x16xf32>
    %48 = vector.shape_cast %47 : vector<1x4x16x16xf32> to vector<4x16x16xf32>
    %cst_19 = arith.constant dense<0xFF800000> : vector<4x16xf32>
    %49 = vector.multi_reduction <maximumf>, %48, %cst_19 [2] : vector<4x16x16xf32> to vector<4x16xf32>
    %50 = vector.shape_cast %49 : vector<4x16xf32> to vector<4x16x1xf32>
    %51 = vector.broadcast %50 : vector<4x16x1xf32> to vector<4x16x16xf32>
    %52 = arith.subf %48, %51 : vector<4x16x16xf32>
    %53 = math.exp %52 : vector<4x16x16xf32>
    %cst_20 = arith.constant dense<0.000000e+00> : vector<4x16xf32>
    %54 = vector.multi_reduction <add>, %53, %cst_20 [2] : vector<4x16x16xf32> to vector<4x16xf32>
    %55 = vector.shape_cast %54 : vector<4x16xf32> to vector<4x16x1xf32>
    %56 = tpu.reciprocal %55 {approx = true} : vector<4x16x1xf32> -> vector<4x16x1xf32>
    %57 = vector.broadcast %56 : vector<4x16x1xf32> to vector<4x16x16xf32>
    %58 = arith.mulf %53, %57 : vector<4x16x16xf32>
    %cst_21 = arith.constant dense<0.000000e+00> : vector<4x16x8xf32>
    %59 = tpu.matmul %58, %41, %cst_21 {dimension_numbers = #tpu.dot_dimension_numbers<[2], [1], [1], [2], [0, 0, 0, 1, 1, 2], [0], [0]>} : vector<4x16x16xf32>, vector<4x16x8xf32>, vector<4x16x8xf32> -> vector<4x16x8xf32>
    %60 = vector.shape_cast %59 : vector<4x16x8xf32> to vector<64x8xf32>
    %c0_22 = arith.constant 0 : index
    %c0_23 = arith.constant 0 : index
    %61 = vector.load %arg10[%c0_22, %c0_23] : memref<64x32xf32, #tpu.memory_space<vmem>>, vector<64x8xf32>
    tpu.vector_store %arg10[%c0_22, %c0_23], %60 {strides = array<i32>} : memref<64x32xf32, #tpu.memory_space<vmem>>, vector<64x8xf32>,
    %62 = vector.extract_strided_slice %35 {offsets = [0, 8], sizes = [64, 8], strides = [1, 1]} : vector<64x96xf32> to vector<64x8xf32>
    %63 = vector.shape_cast %62 : vector<64x8xf32> to vector<4x16x8xf32>
    %64 = vector.extract_strided_slice %35 {offsets = [0, 40], sizes = [64, 8], strides = [1, 1]} : vector<64x96xf32> to vector<64x8xf32>
    %65 = vector.shape_cast %64 : vector<64x8xf32> to vector<4x16x8xf32>
    %66 = vector.extract_strided_slice %35 {offsets = [0, 72], sizes = [64, 8], strides = [1, 1]} : vector<64x96xf32> to vector<64x8xf32>
    %67 = vector.shape_cast %66 : vector<64x8xf32> to vector<4x16x8xf32>
    %cst_24 = arith.constant dense<0.000000e+00> : vector<4x16x16xf32>
    %68 = tpu.matmul %63, %65, %cst_24 {dimension_numbers = #tpu.dot_dimension_numbers<[2], [2], [1], [1], [0, 0, 0, 1, 1, 1], [0], [0]>} : vector<4x16x8xf32>, vector<4x16x8xf32>, vector<4x16x16xf32> -> vector<4x16x16xf32>
    %69 = vector.shape_cast %68 : vector<4x16x16xf32> to vector<1x4x16x16xf32>
    %c1 = arith.constant 1 : index
    %c0_25 = arith.constant 0 : index
    %c0_26 = arith.constant 0 : index
    %c0_27 = arith.constant 0 : index
    %70 = vector.load %arg6[%c1, %c0_25, %c0_26, %c0_27] : memref<4x4x16x16xf32, #tpu.memory_space<vmem>>, vector<1x4x16x16xf32>
    %71 = vector.shape_cast %70 : vector<1x4x16x16xf32> to vector<4x16x16xf32>
    %72 = vector.shape_cast %71 : vector<4x16x16xf32> to vector<1x4x16x16xf32>
    %73 = arith.addf %69, %72 : vector<1x4x16x16xf32>
    %74 = vector.shape_cast %73 : vector<1x4x16x16xf32> to vector<4x16x16xf32>
    %cst_28 = arith.constant dense<0xFF800000> : vector<4x16xf32>
    %75 = vector.multi_reduction <maximumf>, %74, %cst_28 [2] : vector<4x16x16xf32> to vector<4x16xf32>
    %76 = vector.shape_cast %75 : vector<4x16xf32> to vector<4x16x1xf32>
    %77 = vector.broadcast %76 : vector<4x16x1xf32> to vector<4x16x16xf32>
    %78 = arith.subf %74, %77 : vector<4x16x16xf32>
    %79 = math.exp %78 : vector<4x16x16xf32>
    %cst_29 = arith.constant dense<0.000000e+00> : vector<4x16xf32>
    %80 = vector.multi_reduction <add>, %79, %cst_29 [2] : vector<4x16x16xf32> to vector<4x16xf32>
    %81 = vector.shape_cast %80 : vector<4x16xf32> to vector<4x16x1xf32>
    %82 = tpu.reciprocal %81 {approx = true} : vector<4x16x1xf32> -> vector<4x16x1xf32>
    %83 = vector.broadcast %82 : vector<4x16x1xf32> to vector<4x16x16xf32>
    %84 = arith.mulf %79, %83 : vector<4x16x16xf32>
    %cst_30 = arith.constant dense<0.000000e+00> : vector<4x16x8xf32>
    %85 = tpu.matmul %84, %67, %cst_30 {dimension_numbers = #tpu.dot_dimension_numbers<[2], [1], [1], [2], [0, 0, 0, 1, 1, 2], [0], [0]>} : vector<4x16x16xf32>, vector<4x16x8xf32>, vector<4x16x8xf32> -> vector<4x16x8xf32>
    %86 = vector.shape_cast %85 : vector<4x16x8xf32> to vector<64x8xf32>
    %c0_31 = arith.constant 0 : index
    %c8 = arith.constant 8 : index
    %87 = vector.load %arg10[%c0_31, %c8] : memref<64x32xf32, #tpu.memory_space<vmem>>, vector<64x8xf32>
    tpu.vector_store %arg10[%c0_31, %c8], %86 {strides = array<i32>} : memref<64x32xf32, #tpu.memory_space<vmem>>, vector<64x8xf32>,
    %88 = vector.extract_strided_slice %35 {offsets = [0, 16], sizes = [64, 8], strides = [1, 1]} : vector<64x96xf32> to vector<64x8xf32>
    %89 = vector.shape_cast %88 : vector<64x8xf32> to vector<4x16x8xf32>
    %90 = vector.extract_strided_slice %35 {offsets = [0, 48], sizes = [64, 8], strides = [1, 1]} : vector<64x96xf32> to vector<64x8xf32>
    %91 = vector.shape_cast %90 : vector<64x8xf32> to vector<4x16x8xf32>
    %92 = vector.extract_strided_slice %35 {offsets = [0, 80], sizes = [64, 8], strides = [1, 1]} : vector<64x96xf32> to vector<64x8xf32>
    %93 = vector.shape_cast %92 : vector<64x8xf32> to vector<4x16x8xf32>
    %cst_32 = arith.constant dense<0.000000e+00> : vector<4x16x16xf32>
    %94 = tpu.matmul %89, %91, %cst_32 {dimension_numbers = #tpu.dot_dimension_numbers<[2], [2], [1], [1], [0, 0, 0, 1, 1, 1], [0], [0]>} : vector<4x16x8xf32>, vector<4x16x8xf32>, vector<4x16x16xf32> -> vector<4x16x16xf32>
    %95 = vector.shape_cast %94 : vector<4x16x16xf32> to vector<1x4x16x16xf32>
    %c2 = arith.constant 2 : index
    %c0_33 = arith.constant 0 : index
    %c0_34 = arith.constant 0 : index
    %c0_35 = arith.constant 0 : index
    %96 = vector.load %arg6[%c2, %c0_33, %c0_34, %c0_35] : memref<4x4x16x16xf32, #tpu.memory_space<vmem>>, vector<1x4x16x16xf32>
    %97 = vector.shape_cast %96 : vector<1x4x16x16xf32> to vector<4x16x16xf32>
    %98 = vector.shape_cast %97 : vector<4x16x16xf32> to vector<1x4x16x16xf32>
    %99 = arith.addf %95, %98 : vector<1x4x16x16xf32>
    %100 = vector.shape_cast %99 : vector<1x4x16x16xf32> to vector<4x16x16xf32>
    %cst_36 = arith.constant dense<0xFF800000> : vector<4x16xf32>
    %101 = vector.multi_reduction <maximumf>, %100, %cst_36 [2] : vector<4x16x16xf32> to vector<4x16xf32>
    %102 = vector.shape_cast %101 : vector<4x16xf32> to vector<4x16x1xf32>
    %103 = vector.broadcast %102 : vector<4x16x1xf32> to vector<4x16x16xf32>
    %104 = arith.subf %100, %103 : vector<4x16x16xf32>
    %105 = math.exp %104 : vector<4x16x16xf32>
    %cst_37 = arith.constant dense<0.000000e+00> : vector<4x16xf32>
    %106 = vector.multi_reduction <add>, %105, %cst_37 [2] : vector<4x16x16xf32> to vector<4x16xf32>
    %107 = vector.shape_cast %106 : vector<4x16xf32> to vector<4x16x1xf32>
    %108 = tpu.reciprocal %107 {approx = true} : vector<4x16x1xf32> -> vector<4x16x1xf32>
    %109 = vector.broadcast %108 : vector<4x16x1xf32> to vector<4x16x16xf32>
    %110 = arith.mulf %105, %109 : vector<4x16x16xf32>
    %cst_38 = arith.constant dense<0.000000e+00> : vector<4x16x8xf32>
    %111 = tpu.matmul %110, %93, %cst_38 {dimension_numbers = #tpu.dot_dimension_numbers<[2], [1], [1], [2], [0, 0, 0, 1, 1, 2], [0], [0]>} : vector<4x16x16xf32>, vector<4x16x8xf32>, vector<4x16x8xf32> -> vector<4x16x8xf32>
    %112 = vector.shape_cast %111 : vector<4x16x8xf32> to vector<64x8xf32>
    %c0_39 = arith.constant 0 : index
    %c16 = arith.constant 16 : index
    %113 = vector.load %arg10[%c0_39, %c16] : memref<64x32xf32, #tpu.memory_space<vmem>>, vector<64x8xf32>
    tpu.vector_store %arg10[%c0_39, %c16], %112 {strides = array<i32>} : memref<64x32xf32, #tpu.memory_space<vmem>>, vector<64x8xf32>,
    %114 = vector.extract_strided_slice %35 {offsets = [0, 24], sizes = [64, 8], strides = [1, 1]} : vector<64x96xf32> to vector<64x8xf32>
    %115 = vector.shape_cast %114 : vector<64x8xf32> to vector<4x16x8xf32>
    %116 = vector.extract_strided_slice %35 {offsets = [0, 56], sizes = [64, 8], strides = [1, 1]} : vector<64x96xf32> to vector<64x8xf32>
    %117 = vector.shape_cast %116 : vector<64x8xf32> to vector<4x16x8xf32>
    %118 = vector.extract_strided_slice %35 {offsets = [0, 88], sizes = [64, 8], strides = [1, 1]} : vector<64x96xf32> to vector<64x8xf32>
    %119 = vector.shape_cast %118 : vector<64x8xf32> to vector<4x16x8xf32>
    %cst_40 = arith.constant dense<0.000000e+00> : vector<4x16x16xf32>
    %120 = tpu.matmul %115, %117, %cst_40 {dimension_numbers = #tpu.dot_dimension_numbers<[2], [2], [1], [1], [0, 0, 0, 1, 1, 1], [0], [0]>} : vector<4x16x8xf32>, vector<4x16x8xf32>, vector<4x16x16xf32> -> vector<4x16x16xf32>
    %121 = vector.shape_cast %120 : vector<4x16x16xf32> to vector<1x4x16x16xf32>
    %c3 = arith.constant 3 : index
    %c0_41 = arith.constant 0 : index
    %c0_42 = arith.constant 0 : index
    %c0_43 = arith.constant 0 : index
    %122 = vector.load %arg6[%c3, %c0_41, %c0_42, %c0_43] : memref<4x4x16x16xf32, #tpu.memory_space<vmem>>, vector<1x4x16x16xf32>
    %123 = vector.shape_cast %122 : vector<1x4x16x16xf32> to vector<4x16x16xf32>
    %124 = vector.shape_cast %123 : vector<4x16x16xf32> to vector<1x4x16x16xf32>
    %125 = arith.addf %121, %124 : vector<1x4x16x16xf32>
    %126 = vector.shape_cast %125 : vector<1x4x16x16xf32> to vector<4x16x16xf32>
    %cst_44 = arith.constant dense<0xFF800000> : vector<4x16xf32>
    %127 = vector.multi_reduction <maximumf>, %126, %cst_44 [2] : vector<4x16x16xf32> to vector<4x16xf32>
    %128 = vector.shape_cast %127 : vector<4x16xf32> to vector<4x16x1xf32>
    %129 = vector.broadcast %128 : vector<4x16x1xf32> to vector<4x16x16xf32>
    %130 = arith.subf %126, %129 : vector<4x16x16xf32>
    %131 = math.exp %130 : vector<4x16x16xf32>
    %cst_45 = arith.constant dense<0.000000e+00> : vector<4x16xf32>
    %132 = vector.multi_reduction <add>, %131, %cst_45 [2] : vector<4x16x16xf32> to vector<4x16xf32>
    %133 = vector.shape_cast %132 : vector<4x16xf32> to vector<4x16x1xf32>
    %134 = tpu.reciprocal %133 {approx = true} : vector<4x16x1xf32> -> vector<4x16x1xf32>
    %135 = vector.broadcast %134 : vector<4x16x1xf32> to vector<4x16x16xf32>
    %136 = arith.mulf %131, %135 : vector<4x16x16xf32>
    %cst_46 = arith.constant dense<0.000000e+00> : vector<4x16x8xf32>
    %137 = tpu.matmul %136, %119, %cst_46 {dimension_numbers = #tpu.dot_dimension_numbers<[2], [1], [1], [2], [0, 0, 0, 1, 1, 2], [0], [0]>} : vector<4x16x16xf32>, vector<4x16x8xf32>, vector<4x16x8xf32> -> vector<4x16x8xf32>
    %138 = vector.shape_cast %137 : vector<4x16x8xf32> to vector<64x8xf32>
    %c0_47 = arith.constant 0 : index
    %c24 = arith.constant 24 : index
    %139 = vector.load %arg10[%c0_47, %c24] : memref<64x32xf32, #tpu.memory_space<vmem>>, vector<64x8xf32>
    tpu.vector_store %arg10[%c0_47, %c24], %138 {strides = array<i32>} : memref<64x32xf32, #tpu.memory_space<vmem>>, vector<64x8xf32>,
    %c0_48 = arith.constant 0 : index
    %c0_49 = arith.constant 0 : index
    %140 = vector.load %arg10[%c0_48, %c0_49] : memref<64x32xf32, #tpu.memory_space<vmem>>, vector<64x32xf32>
    %c0_50 = arith.constant 0 : index
    %c0_51 = arith.constant 0 : index
    %141 = vector.load %arg7[%c0_50, %c0_51] : memref<32x32xf32, #tpu.memory_space<vmem>>, vector<32x32xf32>
    %cst_52 = arith.constant dense<0.000000e+00> : vector<64x32xf32>
    %142 = tpu.matmul %140, %141, %cst_52 {dimension_numbers = #tpu.dot_dimension_numbers<[1], [0], [0], [1], [0, 0, 1, 1], [], []>} : vector<64x32xf32>, vector<32x32xf32>, vector<64x32xf32> -> vector<64x32xf32>
    %c0_53 = arith.constant 0 : index
    %c0_54 = arith.constant 0 : index
    %143 = vector.load %arg8[%c0_53, %c0_54] : memref<1x32xf32, #tpu.memory_space<vmem>>, vector<1x32xf32>
    %144 = vector.shape_cast %143 : vector<1x32xf32> to vector<32xf32>
    %145 = vector.shape_cast %144 : vector<32xf32> to vector<1x32xf32>
    %146 = vector.broadcast %145 : vector<1x32xf32> to vector<64x32xf32>
    %147 = arith.addf %142, %146 : vector<64x32xf32>
    %c0_55 = arith.constant 0 : index
    %c0_56 = arith.constant 0 : index
    %148 = vector.load %arg9[%c0_55, %c0_56] : memref<64x32xf32, #tpu.memory_space<vmem>>, vector<64x32xf32>
    tpu.vector_store %arg9[%c0_55, %c0_56], %147 {strides = array<i32>} : memref<64x32xf32, #tpu.memory_space<vmem>>, vector<64x32xf32>,
    return
  }
  func.func @transform_0(%arg0: i32) -> (i32, i32) {
    %c0_i32 = arith.constant 0 : i32
    %c0_i32_0 = arith.constant 0 : i32
    return %arg0, %c0_i32 : i32, i32
  }
  func.func @transform_1(%arg0: i32) -> (i32, i32) {
    %c0_i32 = arith.constant 0 : i32
    %c0_i32_0 = arith.constant 0 : i32
    %c0_i32_1 = arith.constant 0 : i32
    return %c0_i32, %c0_i32_0 : i32, i32
  }
  func.func @transform_2(%arg0: i32) -> (i32, i32) {
    %c0_i32 = arith.constant 0 : i32
    %c0_i32_0 = arith.constant 0 : i32
    %c0_i32_1 = arith.constant 0 : i32
    return %c0_i32, %c0_i32_0 : i32, i32
  }
  func.func @transform_3(%arg0: i32) -> (i32, i32) {
    %c0_i32 = arith.constant 0 : i32
    %c0_i32_0 = arith.constant 0 : i32
    %c0_i32_1 = arith.constant 0 : i32
    return %c0_i32, %c0_i32_0 : i32, i32
  }
  func.func @transform_4(%arg0: i32) -> (i32, i32) {
    %c0_i32 = arith.constant 0 : i32
    %c0_i32_0 = arith.constant 0 : i32
    %c0_i32_1 = arith.constant 0 : i32
    return %c0_i32, %c0_i32_0 : i32, i32
  }
  func.func @transform_5(%arg0: i32) -> (i32, i32, i32, i32) {
    %c0_i32 = arith.constant 0 : i32
    %c0_i32_0 = arith.constant 0 : i32
    %c0_i32_1 = arith.constant 0 : i32
    %c0_i32_2 = arith.constant 0 : i32
    %c0_i32_3 = arith.constant 0 : i32
    return %c0_i32, %c0_i32_0, %c0_i32_1, %c0_i32_2 : i32, i32, i32, i32
  }
  func.func @transform_6(%arg0: i32) -> (i32, i32) {
    %c0_i32 = arith.constant 0 : i32
    %c0_i32_0 = arith.constant 0 : i32
    %c0_i32_1 = arith.constant 0 : i32
    return %c0_i32, %c0_i32_0 : i32, i32
  }
  func.func @transform_7(%arg0: i32) -> (i32, i32) {
    %c0_i32 = arith.constant 0 : i32
    %c0_i32_0 = arith.constant 0 : i32
    %c0_i32_1 = arith.constant 0 : i32
    return %c0_i32, %c0_i32_0 : i32, i32
  }
  func.func @transform_8(%arg0: i32) -> (i32, i32) {
    %c0_i32 = arith.constant 0 : i32
    %c0_i32_0 = arith.constant 0 : i32
    return %arg0, %c0_i32 : i32, i32
  }
}

</mosaic_0001>

<llo_original>
// kernel: _lambda_.1
$region0: #{_lambda_.1}
  #allocation0 [shape = 'u32[]', space=smem, size = 0x4, offset = 0x4, fixed_abs, tag = 'smem constant byte address 0x4 - core index']
  #allocation1 [shape = 'u32[72,128]{1,0:T(1,128)}', space=vmem, size = 0x9000, scoped, tag = 'internal scratch']
  #allocation2 [shape = 'f32[64,32]{1,0:T(8,128)}', space=vmem, size = 0x8000, scoped, tag = 'scratch operand']
  %s0 = inlined_call_operand.vmem [shape: f32[128,32], index: 0, kind: input, shape index: {}]
  %s1 = inlined_call_operand.vmem [shape: f32[1,32], index: 1, kind: input, shape index: {}]
  %s2 = inlined_call_operand.vmem [shape: f32[1,32], index: 2, kind: input, shape index: {}]
  %s3 = inlined_call_operand.vmem [shape: f32[32,96], index: 3, kind: input, shape index: {}]
  %s4 = inlined_call_operand.vmem [shape: f32[1,96], index: 4, kind: input, shape index: {}]
  %s5 = inlined_call_operand.vmem [shape: f32[4,4,16,16], index: 5, kind: input, shape index: {}]
  %s6 = inlined_call_operand.vmem [shape: f32[32,32], index: 6, kind: input, shape index: {}]
  %s7 = inlined_call_operand.vmem [shape: f32[1,32], index: 7, kind: input, shape index: {}]
  %s8 = inlined_call_operand.vmem [shape: f32[128,32], index: 8, kind: output, shape index: {}]
  %s9 = sld [smem:[#allocation0]]
  $region65: #{_lambda_.1} parent=0
    _
  %s11 = ssub.s32 1, %s9
  %s12 = scalar_select 0, %s11, %s9
  loop: start=0, step=1, limit=4
  $region2: #{_lambda_.1} parent=0 // loop_pre_header
    _
  $region3: #{_lambda_.1} parent=0 // loop_header
    %s14 = sphi 0, %s18
    %p15 = scmp.ge.s32.totalorder %s14, 4
    %s24 = sphi 0, %s26
    %s27 = sphi 0, %s24
    %s28 = sphi 0, %s27
    %s44 = sphi 0, %s28
    %s48 = sphi 0, %s48
    %s50 = sphi 0, %s48
    %s51 = sphi 0, %s50
    %s65 = sphi 0, %s51
    %s69 = sphi 0, %s69
    %s71 = sphi 0, %s69
    %s72 = sphi 0, %s71
    %s86 = sphi 0, %s72
    %s90 = sphi 0, %s90
    %s92 = sphi 0, %s90
    %s93 = sphi 0, %s92
    %s107 = sphi 0, %s93
    %s111 = sphi 0, %s111
    %s113 = sphi 0, %s111
    %s114 = sphi 0, %s113
    %s128 = sphi 0, %s114
    %s132 = sphi 0, %s132
    %s134 = sphi 0, %s132
    %s135 = sphi 0, %s134
    %s149 = sphi 0, %s135
    %s153 = sphi 0, %s153
    %s155 = sphi 0, %s153
    %s156 = sphi 0, %s155
    %s170 = sphi 0, %s156
    %s174 = sphi 0, %s174
    %s176 = sphi 0, %s174
    %s177 = sphi 0, %s176
    %s191 = sphi 0, %s177
    %s197 = sphi 0, %s199
    %s200 = sphi 0, %s197
    %s201 = sphi 0, %s200
    %s217 = sphi 0, %s201
  $region4: #{_lambda_.1} parent=0 // loop_header_branch
    %17 = sbr.rel (%p15) target = $region8
  $region5: #{_lambda_.1} parent=0 // loop_body
    %s19 = ssub.s32 %s14, 1
    %s20 = ssub.s32 %s14, 2
    %s21 = sadd.s32 %s14, 1
    %s22 = ssub.s32 %s14, %s21
    %p23 = scmp.eq.s32.totalorder %s22, 0
    %s25 = sadd.s32 %s24, 1
    %s26 = scalar_select %p23, %s24, %s25
    %p29 = pneg %p23
    %p30 = scmp.eq.s32.totalorder %s14, 1
    %p31 = por %p29, %p30
    %p32 = scmp.ne.s32.totalorder %s24, %s27
    %p33 = scmp.eq.s32.totalorder %s14, 0
    %p34 = por %p32, %p33
    %p35 = scmp.ne.s32.totalorder %s24, %s27
    %p36 = scmp.eq.s32.totalorder %s19, 1
    %p37 = por %p35, %p36
    %p38 = scmp.ne.s32.totalorder %s27, %s28
    %p39 = scmp.eq.s32.totalorder %s19, 0
    %p40 = por %p38, %p39
    %p41 = scmp.ne.s32.totalorder %s27, %s28
    %p42 = scmp.eq.s32.totalorder %s20, 1
    %p43 = por %p41, %p42
    %p45 = scmp.ne.s32.totalorder %s28, %s44
    %p46 = scmp.eq.s32.totalorder %s20, 0
    %p47 = por %p45, %p46
    %s49 = sadd.s32 %s48, 1
    %p52 = scmp.eq.s32.totalorder %s14, 1
    %p53 = scmp.ne.s32.totalorder %s48, %s50
    %p54 = scmp.eq.s32.totalorder %s14, 0
    %p55 = por %p53, %p54
    %p56 = scmp.ne.s32.totalorder %s48, %s50
    %p57 = scmp.eq.s32.totalorder %s19, 1
    %p58 = por %p56, %p57
    %p59 = scmp.ne.s32.totalorder %s50, %s51
    %p60 = scmp.eq.s32.totalorder %s19, 0
    %p61 = por %p59, %p60
    %p62 = scmp.ne.s32.totalorder %s50, %s51
    %p63 = scmp.eq.s32.totalorder %s20, 1
    %p64 = por %p62, %p63
    %p66 = scmp.ne.s32.totalorder %s51, %s65
    %p67 = scmp.eq.s32.totalorder %s20, 0
    %p68 = por %p66, %p67
    %s70 = sadd.s32 %s69, 1
    %p73 = scmp.eq.s32.totalorder %s14, 1
    %p74 = scmp.ne.s32.totalorder %s69, %s71
    %p75 = scmp.eq.s32.totalorder %s14, 0
    %p76 = por %p74, %p75
    %p77 = scmp.ne.s32.totalorder %s69, %s71
    %p78 = scmp.eq.s32.totalorder %s19, 1
    %p79 = por %p77, %p78
    %p80 = scmp.ne.s32.totalorder %s71, %s72
    %p81 = scmp.eq.s32.totalorder %s19, 0
    %p82 = por %p80, %p81
    %p83 = scmp.ne.s32.totalorder %s71, %s72
    %p84 = scmp.eq.s32.totalorder %s20, 1
    %p85 = por %p83, %p84
    %p87 = scmp.ne.s32.totalorder %s72, %s86
    %p88 = scmp.eq.s32.totalorder %s20, 0
    %p89 = por %p87, %p88
    %s91 = sadd.s32 %s90, 1
    %p94 = scmp.eq.s32.totalorder %s14, 1
    %p95 = scmp.ne.s32.totalorder %s90, %s92
    %p96 = scmp.eq.s32.totalorder %s14, 0
    %p97 = por %p95, %p96
    %p98 = scmp.ne.s32.totalorder %s90, %s92
    %p99 = scmp.eq.s32.totalorder %s19, 1
    %p100 = por %p98, %p99
    %p101 = scmp.ne.s32.totalorder %s92, %s93
    %p102 = scmp.eq.s32.totalorder %s19, 0
    %p103 = por %p101, %p102
    %p104 = scmp.ne.s32.totalorder %s92, %s93
    %p105 = scmp.eq.s32.totalorder %s20, 1
    %p106 = por %p104, %p105
    %p108 = scmp.ne.s32.totalorder %s93, %s107
    %p109 = scmp.eq.s32.totalorder %s20, 0
    %p110 = por %p108, %p109
    %s112 = sadd.s32 %s111, 1
    %p115 = scmp.eq.s32.totalorder %s14, 1
    %p116 = scmp.ne.s32.totalorder %s111, %s113
    %p117 = scmp.eq.s32.totalorder %s14, 0
    %p118 = por %p116, %p117
    %p119 = scmp.ne.s32.totalorder %s111, %s113
    %p120 = scmp.eq.s32.totalorder %s19, 1
    %p121 = por %p119, %p120
    %p122 = scmp.ne.s32.totalorder %s113, %s114
    %p123 = scmp.eq.s32.totalorder %s19, 0
    %p124 = por %p122, %p123
    %p125 = scmp.ne.s32.totalorder %s113, %s114
    %p126 = scmp.eq.s32.totalorder %s20, 1
    %p127 = por %p125, %p126
    %p129 = scmp.ne.s32.totalorder %s114, %s128
    %p130 = scmp.eq.s32.totalorder %s20, 0
    %p131 = por %p129, %p130
    %s133 = sadd.s32 %s132, 1
    %p136 = scmp.eq.s32.totalorder %s14, 1
    %p137 = scmp.ne.s32.totalorder %s132, %s134
    %p138 = scmp.eq.s32.totalorder %s14, 0
    %p139 = por %p137, %p138
    %p140 = scmp.ne.s32.totalorder %s132, %s134
    %p141 = scmp.eq.s32.totalorder %s19, 1
    %p142 = por %p140, %p141
    %p143 = scmp.ne.s32.totalorder %s134, %s135
    %p144 = scmp.eq.s32.totalorder %s19, 0
    %p145 = por %p143, %p144
    %p146 = scmp.ne.s32.totalorder %s134, %s135
    %p147 = scmp.eq.s32.totalorder %s20, 1
    %p148 = por %p146, %p147
    %p150 = scmp.ne.s32.totalorder %s135, %s149
    %p151 = scmp.eq.s32.totalorder %s20, 0
    %p152 = por %p150, %p151
    %s154 = sadd.s32 %s153, 1
    %p157 = scmp.eq.s32.totalorder %s14, 1
    %p158 = scmp.ne.s32.totalorder %s153, %s155
    %p159 = scmp.eq.s32.totalorder %s14, 0
    %p160 = por %p158, %p159
    %p161 = scmp.ne.s32.totalorder %s153, %s155
    %p162 = scmp.eq.s32.totalorder %s19, 1
    %p163 = por %p161, %p162
    %p164 = scmp.ne.s32.totalorder %s155, %s156
    %p165 = scmp.eq.s32.totalorder %s19, 0
    %p166 = por %p164, %p165
    %p167 = scmp.ne.s32.totalorder %s155, %s156
    %p168 = scmp.eq.s32.totalorder %s20, 1
    %p169 = por %p167, %p168
    %p171 = scmp.ne.s32.totalorder %s156, %s170
    %p172 = scmp.eq.s32.totalorder %s20, 0
    %p173 = por %p171, %p172
    %s175 = sadd.s32 %s174, 1
    %p178 = scmp.eq.s32.totalorder %s14, 1
    %p179 = scmp.ne.s32.totalorder %s174, %s176
    %p180 = scmp.eq.s32.totalorder %s14, 0
    %p181 = por %p179, %p180
    %p182 = scmp.ne.s32.totalorder %s174, %s176
    %p183 = scmp.eq.s32.totalorder %s19, 1
    %p184 = por %p182, %p183
    %p185 = scmp.ne.s32.totalorder %s176, %s177
    %p186 = scmp.eq.s32.totalorder %s19, 0
    %p187 = por %p185, %p186
    %p188 = scmp.ne.s32.totalorder %s176, %s177
    %p189 = scmp.eq.s32.totalorder %s20, 1
    %p190 = por %p188, %p189
    %p192 = scmp.ne.s32.totalorder %s177, %s191
    %p193 = scmp.eq.s32.totalorder %s20, 0
    %p194 = por %p192, %p193
    %s195 = ssub.s32 %s14, %s21
    %p196 = scmp.eq.s32.totalorder %s195, 0
    %s198 = sadd.s32 %s197, 1
    %s199 = scalar_select %p196, %s197, %s198
    %p202 = pneg %p196
    %p203 = scmp.eq.s32.totalorder %s14, 1
    %p204 = por %p202, %p203
    %p205 = scmp.ne.s32.totalorder %s197, %s200
    %p206 = scmp.eq.s32.totalorder %s14, 0
    %p207 = por %p205, %p206
    %p208 = scmp.ne.s32.totalorder %s197, %s200
    %p209 = scmp.eq.s32.totalorder %s19, 1
    %p210 = por %p208, %p209
    %p211 = scmp.ne.s32.totalorder %s200, %s201
    %p212 = scmp.eq.s32.totalorder %s19, 0
    %p213 = por %p211, %p212
    %p214 = scmp.ne.s32.totalorder %s200, %s201
    %p215 = scmp.eq.s32.totalorder %s20, 1
    %p216 = por %p214, %p215
    %p218 = scmp.ne.s32.totalorder %s201, %s217
    %p219 = scmp.eq.s32.totalorder %s20, 0
    %p220 = por %p218, %p219
    %p221 = scmp.le.s32.totalorder 1, %s14
    %p222 = scmp.lt.s32.totalorder %s14, 3
    %p223 = pnand %p221, %p222
    %p224 = pneg %p223
    // Predicated region
    $region9: #{_lambda_.1} parent=5 // pred_check
      _
    $region10: #{_lambda_.1} parent=5 // pred_check_branch
      %226 = sbr.rel (%p223) target = $region12
    $region11: #{_lambda_.1} parent=5 // pred_region
      %s227 = ssub.s32 %s14, 1
      // Predicated region
      $region13: #{_lambda_.1} parent=11 // pred_check
        %p228 = pneg %p61
      $region14: #{_lambda_.1} parent=11 // pred_check_branch
        %230 = sbr.rel (%p228) target = $region16
      $region15: #{_lambda_.1} parent=11 // pred_region
        _
      $region16: #{_lambda_.1} parent=11 // pred_fallthru
        _
      // Predicated region
      $region17: #{_lambda_.1} parent=11 // pred_check
        %p231 = pneg %p82
      $region18: #{_lambda_.1} parent=11 // pred_check_branch
        %233 = sbr.rel (%p231) target = $region20
      $region19: #{_lambda_.1} parent=11 // pred_region
        _
      $region20: #{_lambda_.1} parent=11 // pred_fallthru
        _
      // Predicated region
      $region21: #{_lambda_.1} parent=11 // pred_check
        %p234 = pneg %p103
      $region22: #{_lambda_.1} parent=11 // pred_check_branch
        %236 = sbr.rel (%p234) target = $region24
      $region23: #{_lambda_.1} parent=11 // pred_region
        _
      $region24: #{_lambda_.1} parent=11 // pred_fallthru
        _
      // Predicated region
      $region25: #{_lambda_.1} parent=11 // pred_check
        %p237 = pneg %p124
      $region26: #{_lambda_.1} parent=11 // pred_check_branch
        %239 = sbr.rel (%p237) target = $region28
      $region27: #{_lambda_.1} parent=11 // pred_region
        _
      $region28: #{_lambda_.1} parent=11 // pred_fallthru
        _
      // Predicated region
      $region29: #{_lambda_.1} parent=11 // pred_check
        %p240 = pneg %p145
      $region30: #{_lambda_.1} parent=11 // pred_check_branch
        %242 = sbr.rel (%p240) target = $region32
      $region31: #{_lambda_.1} parent=11 // pred_region
        _
      $region32: #{_lambda_.1} parent=11 // pred_fallthru
        _
      // Predicated region
      $region33: #{_lambda_.1} parent=11 // pred_check
        %p243 = pneg %p166
      $region34: #{_lambda_.1} parent=11 // pred_check_branch
        %245 = sbr.rel (%p243) target = $region36
      $region35: #{_lambda_.1} parent=11 // pred_region
        _
      $region36: #{_lambda_.1} parent=11 // pred_fallthru
        _
      // Predicated region
      $region37: #{_lambda_.1} parent=11 // pred_check
        %p246 = pneg %p187
      $region38: #{_lambda_.1} parent=11 // pred_check_branch
        %248 = sbr.rel (%p246) target = $region40
      $region39: #{_lambda_.1} parent=11 // pred_region
        _
      $region40: #{_lambda_.1} parent=11 // pred_fallthru
        _
    $region12: #{_lambda_.1} parent=5 // pred_fallthru
      _
    %p249 = scmp.lt.s32.totalorder %s14, 2
    // Predicated region
    $region41: #{_lambda_.1} parent=5 // pred_check
      %p250 = pneg %p249
    $region42: #{_lambda_.1} parent=5 // pred_check_branch
      %252 = sbr.rel (%p250) target = $region44
    $region43: #{_lambda_.1} parent=5 // pred_region
      // Predicated region
      $region45: #{_lambda_.1} parent=43 // pred_check
        %p253 = pneg %p34
      $region46: #{_lambda_.1} parent=43 // pred_check_branch
        %255 = sbr.rel (%p253) target = $region48
      $region47: #{_lambda_.1} parent=43 // pred_region
        %s256 = smul.u32 8, %s14
        %p257 = scmp.lt.s32.totalorder %s256, 15
        %s258 = scalar_select %p257, %s256, 15
        %s259 = smul.addr %s258, 8
        %s260 = scalar_lea.vmem %s0, %s259
        %s261 = smul.u32 8, %s14
      $region48: #{_lambda_.1} parent=43 // pred_fallthru
        _
    $region44: #{_lambda_.1} parent=5 // pred_fallthru
      _
    %p262 = scmp.le.s32.totalorder 1, %s14
    %p263 = scmp.lt.s32.totalorder %s14, 3
    %p264 = pnand %p262, %p263
    %p265 = pneg %p264
    // Predicated region
    $region49: #{_lambda_.1} parent=5 // pred_check
      _
    $region50: #{_lambda_.1} parent=5 // pred_check_branch
      %267 = sbr.rel (%p264) target = $region52
    $region51: #{_lambda_.1} parent=5 // pred_region
      %s268 = ssub.s32 %s14, 1
      %s269 = smul.u32 8, %s19
      %p270 = scmp.lt.s32.totalorder %s269, 15
      %s271 = scalar_select %p270, %s269, 15
      %s272 = smul.addr %s271, 8
      %s273 = scalar_lea.vmem %s0, %s272
      %p274 = pneg %p40
      %p275 = pneg %p37
      %p276 = pneg %p61
      %p277 = pneg %p58
      %p278 = pneg %p82
      %p279 = pneg %p79
      %p280 = pneg %p103
      %p281 = pneg %p100
      %p282 = pneg %p124
      %p283 = pneg %p121
      %p284 = pneg %p145
      %p285 = pneg %p142
      %p286 = pneg %p166
      %p287 = pneg %p163
      %p288 = pneg %p187
      %p289 = pneg %p184
      %p290 = pneg %p213
      %p291 = pneg %p210
      %s292 = smul.u32 8, %s19
      %p293 = scmp.lt.s32.totalorder %s292, 15
      %s294 = scalar_select %p293, %s292, 15
      %s295 = smul.addr %s294, 8
      %s296 = scalar_lea.vmem %s8, %s295
      %s297 = smul.u32 8, %s19
      %p298 = scmp.lt.s32.totalorder %s297, 15
      %s299 = scalar_select %p298, %s297, 15
      %s300 = smul.addr %s299, 8
      %s301 = scalar_lea.vmem %s0, %s300
      %s302 = smul.u32 8, %s19
      %s303 = smul.u32 8, %s19
      %p304 = scmp.lt.s32.totalorder %s303, 15
      %s305 = scalar_select %p304, %s303, 15
      %s306 = smul.addr %s305, 8
      %s307 = scalar_lea.vmem %s8, %s306
      %s308 = smul.u32 8, %s19
      %v309 = vld [vmem:[%s301] sm:$0xff]
      %v310 = vld [vmem:[%s301 + $0x8] sm:$0xff]
      %v311 = vld [vmem:[%s301 + $0x10] sm:$0xff]
      %v312 = vld [vmem:[%s301 + $0x18] sm:$0xff]
      %v313 = vld [vmem:[%s301 + $0x20] sm:$0xff]
      %v314 = vld [vmem:[%s301 + $0x28] sm:$0xff]
      %v315 = vld [vmem:[%s301 + $0x30] sm:$0xff]
      %v316 = vld [vmem:[%s301 + $0x38] sm:$0xff]
      %vm317 = vcmask 261120
      %v318 = vsel %vm317, %v309, 0.0
      %319 = vadd.xlane.f32.xlu0 %v318
      %v320 = vpop.xlane.xlu0 %319
      %v321 = vsel %vm317, %v310, 0.0
      %322 = vadd.xlane.f32.xlu0 %v321
      %v323 = vpop.xlane.xlu0 %322
      %v324 = vsel %vm317, %v311, 0.0
      %325 = vadd.xlane.f32.xlu0 %v324
      %v326 = vpop.xlane.xlu0 %325
      %v327 = vsel %vm317, %v312, 0.0
      %328 = vadd.xlane.f32.xlu0 %v327
      %v329 = vpop.xlane.xlu0 %328
      %v330 = vsel %vm317, %v313, 0.0
      %331 = vadd.xlane.f32.xlu0 %v330
      %v332 = vpop.xlane.xlu0 %331
      %v333 = vsel %vm317, %v314, 0.0
      %334 = vadd.xlane.f32.xlu0 %v333
      %v335 = vpop.xlane.xlu0 %334
      %v336 = vsel %vm317, %v315, 0.0
      %337 = vadd.xlane.f32.xlu0 %v336
      %v338 = vpop.xlane.xlu0 %337
      %v339 = vsel %vm317, %v316, 0.0
      %340 = vadd.xlane.f32.xlu0 %v339
      %v341 = vpop.xlane.xlu0 %340
      %v342 = vrcp.pop 32.0
      %v343 = vmul.f32 32.0, %v342
      %v344 = vsub.f32 1.0, %v343
      %v345 = vmul.f32 %v342, %v344
      %v346 = vadd.f32 %v342, %v345
      %vm347 = vweird.f32 %v342
      %v348 = vsel %vm347, %v342, %v346
      %v349 = vmul.f32 %v320, %v348
      %v350 = vmul.f32 %v323, %v348
      %v351 = vmul.f32 %v326, %v348
      %v352 = vmul.f32 %v329, %v348
      %v353 = vmul.f32 %v332, %v348
      %v354 = vmul.f32 %v335, %v348
      %v355 = vmul.f32 %v338, %v348
      %v356 = vmul.f32 %v341, %v348
      %v357 = vsub.f32 %v309, %v349
      %v358 = vsub.f32 %v310, %v350
      %v359 = vsub.f32 %v311, %v351
      %v360 = vsub.f32 %v312, %v352
      %v361 = vsub.f32 %v313, %v353
      %v362 = vsub.f32 %v314, %v354
      %v363 = vsub.f32 %v315, %v355
      %v364 = vsub.f32 %v316, %v356
      %v365 = vmul.f32 %v357, %v357
      %v366 = vmul.f32 %v358, %v358
      %v367 = vmul.f32 %v359, %v359
      %v368 = vmul.f32 %v360, %v360
      %v369 = vmul.f32 %v361, %v361
      %v370 = vmul.f32 %v362, %v362
      %v371 = vmul.f32 %v363, %v363
      %v372 = vmul.f32 %v364, %v364
      %v373 = vsel %vm317, %v365, 0.0
      %374 = vadd.xlane.f32.xlu0 %v373
      %v375 = vpop.xlane.xlu0 %374
      %v376 = vsel %vm317, %v366, 0.0
      %377 = vadd.xlane.f32.xlu0 %v376
      %v378 = vpop.xlane.xlu0 %377
      %v379 = vsel %vm317, %v367, 0.0
      %380 = vadd.xlane.f32.xlu0 %v379
      %v381 = vpop.xlane.xlu0 %380
      %v382 = vsel %vm317, %v368, 0.0
      %383 = vadd.xlane.f32.xlu0 %v382
      %v384 = vpop.xlane.xlu0 %383
      %v385 = vsel %vm317, %v369, 0.0
      %386 = vadd.xlane.f32.xlu0 %v385
      %v387 = vpop.xlane.xlu0 %386
      %v388 = vsel %vm317, %v370, 0.0
      %389 = vadd.xlane.f32.xlu0 %v388
      %v390 = vpop.xlane.xlu0 %389
      %v391 = vsel %vm317, %v371, 0.0
      %392 = vadd.xlane.f32.xlu0 %v391
      %v393 = vpop.xlane.xlu0 %392
      %v394 = vsel %vm317, %v372, 0.0
      %395 = vadd.xlane.f32.xlu0 %v394
      %v396 = vpop.xlane.xlu0 %395
      %v397 = vmul.f32 %v375, %v348
      %v398 = vmul.f32 %v378, %v348
      %v399 = vmul.f32 %v381, %v348
      %v400 = vmul.f32 %v384, %v348
      %v401 = vmul.f32 %v387, %v348
      %v402 = vmul.f32 %v390, %v348
      %v403 = vmul.f32 %v393, %v348
      %v404 = vmul.f32 %v396, %v348
      %v405 = vadd.f32 %v397, 1e-05
      %v406 = vadd.f32 %v398, 1e-05
      %v407 = vadd.f32 %v399, 1e-05
      %v408 = vadd.f32 %v400, 1e-05
      %v409 = vadd.f32 %v401, 1e-05
      %v410 = vadd.f32 %v402, 1e-05
      %v411 = vadd.f32 %v403, 1e-05
      %v412 = vadd.f32 %v404, 1e-05
      %v413 = vrsqrt.pop %v405
      %v414 = vmul.f32 %v413, %v405
      %v415 = vmul.f32 %v414, %v413
      %v416 = vmul.f32 0.5, %v415
      %v417 = vsub.f32 1.5, %v416
      %v418 = vmul.f32 %v413, %v417
      %vm419 = vweird.f32 %v405
      %vm420 = vweird.f32 %v413
      %vm421 = vmor %vm419, %vm420
      %v422 = vsel %vm421, %v413, %v418
      %v423 = vrsqrt.pop %v406
      %v424 = vmul.f32 %v423, %v406
      %v425 = vmul.f32 %v424, %v423
      %v426 = vmul.f32 0.5, %v425
      %v427 = vsub.f32 1.5, %v426
      %v428 = vmul.f32 %v423, %v427
      %vm429 = vweird.f32 %v406
      %vm430 = vweird.f32 %v423
      %vm431 = vmor %vm429, %vm430
      %v432 = vsel %vm431, %v423, %v428
      %v433 = vrsqrt.pop %v407
      %v434 = vmul.f32 %v433, %v407
      %v435 = vmul.f32 %v434, %v433
      %v436 = vmul.f32 0.5, %v435
      %v437 = vsub.f32 1.5, %v436
      %v438 = vmul.f32 %v433, %v437
      %vm439 = vweird.f32 %v407
      %vm440 = vweird.f32 %v433
      %vm441 = vmor %vm439, %vm440
      %v442 = vsel %vm441, %v433, %v438
      %v443 = vrsqrt.pop %v408
      %v444 = vmul.f32 %v443, %v408
      %v445 = vmul.f32 %v444, %v443
      %v446 = vmul.f32 0.5, %v445
      %v447 = vsub.f32 1.5, %v446
      %v448 = vmul.f32 %v443, %v447
      %vm449 = vweird.f32 %v408
      %vm450 = vweird.f32 %v443
      %vm451 = vmor %vm449, %vm450
      %v452 = vsel %vm451, %v443, %v448
      %v453 = vrsqrt.pop %v409
      %v454 = vmul.f32 %v453, %v409
      %v455 = vmul.f32 %v454, %v453
      %v456 = vmul.f32 0.5, %v455
      %v457 = vsub.f32 1.5, %v456
      %v458 = vmul.f32 %v453, %v457
      %vm459 = vweird.f32 %v409
      %vm460 = vweird.f32 %v453
      %vm461 = vmor %vm459, %vm460
      %v462 = vsel %vm461, %v453, %v458
      %v463 = vrsqrt.pop %v410
      %v464 = vmul.f32 %v463, %v410
      %v465 = vmul.f32 %v464, %v463
      %v466 = vmul.f32 0.5, %v465
      %v467 = vsub.f32 1.5, %v466
      %v468 = vmul.f32 %v463, %v467
      %vm469 = vweird.f32 %v410
      %vm470 = vweird.f32 %v463
      %vm471 = vmor %vm469, %vm470
      %v472 = vsel %vm471, %v463, %v468
      %v473 = vrsqrt.pop %v411
      %v474 = vmul.f32 %v473, %v411
      %v475 = vmul.f32 %v474, %v473
      %v476 = vmul.f32 0.5, %v475
      %v477 = vsub.f32 1.5, %v476
      %v478 = vmul.f32 %v473, %v477
      %vm479 = vweird.f32 %v411
      %vm480 = vweird.f32 %v473
      %vm481 = vmor %vm479, %vm480
      %v482 = vsel %vm481, %v473, %v478
      %v483 = vrsqrt.pop %v412
      %v484 = vmul.f32 %v483, %v412
      %v485 = vmul.f32 %v484, %v483
      %v486 = vmul.f32 0.5, %v485
      %v487 = vsub.f32 1.5, %v486
      %v488 = vmul.f32 %v483, %v487
      %vm489 = vweird.f32 %v412
      %vm490 = vweird.f32 %v483
      %vm491 = vmor %vm489, %vm490
      %v492 = vsel %vm491, %v483, %v488
      %v493 = vmul.f32 %v357, %v422
      %v494 = vmul.f32 %v358, %v432
      %v495 = vmul.f32 %v359, %v442
      %v496 = vmul.f32 %v360, %v452
      %v497 = vmul.f32 %v361, %v462
      %v498 = vmul.f32 %v362, %v472
      %v499 = vmul.f32 %v363, %v482
      %v500 = vmul.f32 %v364, %v492
      %v501 = vld [vmem:[%s1] sm:$0x1]
      %v503 = vperm.slane %v501, 0
      %v505 = vmul.f32 %v493, %v503
      %v506 = vmul.f32 %v494, %v503
      %v507 = vmul.f32 %v495, %v503
      %v508 = vmul.f32 %v496, %v503
      %v509 = vmul.f32 %v497, %v503
      %v510 = vmul.f32 %v498, %v503
      %v511 = vmul.f32 %v499, %v503
      %v512 = vmul.f32 %v500, %v503
      %v513 = vld [vmem:[%s2] sm:$0x1]
      %v515 = vperm.slane %v513, 0
      %v517 = vadd.f32 %v505, %v515
      %v518 = vadd.f32 %v506, %v515
      %v519 = vadd.f32 %v507, %v515
      %v520 = vadd.f32 %v508, %v515
      %v521 = vadd.f32 %v509, %v515
      %v522 = vadd.f32 %v510, %v515
      %v523 = vadd.f32 %v511, %v515
      %v524 = vadd.f32 %v512, %v515
      %v525 = vld [vmem:[%s3] sm:$0xff]
      %v526 = vld [vmem:[%s3 + $0x8] sm:$0xff]
      %v527 = vld [vmem:[%s3 + $0x10] sm:$0xff]
      %v528 = vld [vmem:[%s3 + $0x18] sm:$0xff]
      %v529 = vld [vmem:[%s4] sm:$0x1]
      %v531 = vperm.slane %v529, 0
      %v534 = vsel %vm317, %v517, 0
      %v537 = vsel %vm317, %v518, 0
      %v540 = vsel %vm317, %v519, 0
      %v543 = vsel %vm317, %v520, 0
      %v546 = vsel %vm317, %v521, 0
      %v549 = vsel %vm317, %v522, 0
      %v552 = vsel %vm317, %v523, 0
      %v555 = vsel %vm317, %v524, 0
      %557 = vmatpush.msra.mxu0 0.0
      %558 = vmatpush.msra.mxu0 0.0
      %559 = vmatpush.msra.mxu0 0.0
      %560 = vmatpush.msra.mxu0 0.0
      %561 = vmatpush.msra.mxu0 0.0
      %562 = vmatpush.msra.mxu0 0.0
      %563 = vmatpush.msra.mxu0 0.0
      %564 = vmatpush.msra.mxu0 0.0
      %565 = vmatpush.msra.mxu0 0.0
      %566 = vmatpush.msra.mxu0 0.0
      %567 = vmatpush.msra.mxu0 0.0
      %568 = vmatpush.msra.mxu0 0.0
      %569 = vmatpush.msra.mxu0 %v528
      %570 = vmatpush.msra.mxu0 %v527
      %571 = vmatpush.msra.mxu0 %v526
      %572 = vmatpush.msra.mxu0 %v525
      %573 = vmatmul.f32.gmra.mxu0 %v534
      %v574 = vpop.f32.mrf.mxu0
      %v575 = vadd.f32 %v531, %v574
      %576 = vmatmul.f32.gmra.mxu0 %v537
      %v577 = vpop.f32.mrf.mxu0
      %v578 = vadd.f32 %v531, %v577
      %579 = vmatmul.f32.gmra.mxu0 %v540
      %v580 = vpop.f32.mrf.mxu0
      %v581 = vadd.f32 %v531, %v580
      %582 = vmatmul.f32.gmra.mxu0 %v543
      %v583 = vpop.f32.mrf.mxu0
      %v584 = vadd.f32 %v531, %v583
      %585 = vmatmul.f32.gmra.mxu0 %v546
      %v586 = vpop.f32.mrf.mxu0
      %v587 = vadd.f32 %v531, %v586
      %588 = vmatmul.f32.gmra.mxu0 %v549
      %v589 = vpop.f32.mrf.mxu0
      %v590 = vadd.f32 %v531, %v589
      %591 = vmatmul.f32.gmra.mxu0 %v552
      %v592 = vpop.f32.mrf.mxu0
      %v593 = vadd.f32 %v531, %v592
      %594 = vmatmul.f32.gmra.mxu0 %v555
      %v595 = vpop.f32.mrf.mxu0
      %v596 = vadd.f32 %v531, %v595
      %597 = vdwg.mxu0
      %600 = vrot.lane.b32.xlu0 %v575, 96
      %v601 = vpop.permute.xlu0 %600
      %602 = vrot.lane.b32.xlu0 %v578, 96
      %v603 = vpop.permute.xlu0 %602
      %vm604 = vcmask 64512
      %v605 = vsel %vm604, %v575, 0
      %v607 = vsel %vm604, %v578, 0
      %v609 = vsel %vm604, %v601, 0
      %v611 = vsel %vm604, %v603, 0
      %613 = vmatpush.xpose.msra.mxu0 0.0
      %614 = vmatpush.xpose.msra.mxu0 0.0
      %615 = vmatpush.xpose.msra.mxu0 0.0
      %616 = vmatpush.xpose.msra.mxu0 0.0
      %617 = vmatpush.xpose.msra.mxu0 0.0
      %618 = vmatpush.xpose.msra.mxu0 0.0
      %619 = vmatpush.xpose.msra.mxu0 0.0
      %620 = vmatpush.xpose.msra.mxu0 0.0
      %621 = vmatpush.xpose.msra.mxu0 0.0
      %622 = vmatpush.xpose.msra.mxu0 0.0
      %623 = vmatpush.xpose.msra.mxu0 0.0
      %624 = vmatpush.xpose.msra.mxu0 0.0
      %625 = vmatpush.xpose.msra.mxu0 0.0
      %626 = vmatpush.xpose.msra.mxu0 0.0
      %627 = vmatpush.xpose.msra.mxu0 %v611
      %628 = vmatpush.xpose.msra.mxu0 %v609
      %629 = vmatmul.f32.gmra.mxu0 %v605
      %v630 = vpop.f32.mrf.mxu0
      %v631 = vadd.f32 0.0, %v630
      %632 = vmatmul.f32.gmra.mxu0 %v607
      %v633 = vpop.f32.mrf.mxu0
      %v634 = vadd.f32 0.0, %v633
      %635 = vdwg.mxu0
      %638 = vrot.lane.b32.xlu0 %v581, 96
      %v639 = vpop.permute.xlu0 %638
      %640 = vrot.lane.b32.xlu0 %v584, 96
      %v641 = vpop.permute.xlu0 %640
      %v642 = vsel %vm604, %v581, 0
      %v644 = vsel %vm604, %v584, 0
      %v646 = vsel %vm604, %v639, 0
      %v648 = vsel %vm604, %v641, 0
      %650 = vmatpush.xpose.msra.mxu0 0.0
      %651 = vmatpush.xpose.msra.mxu0 0.0
      %652 = vmatpush.xpose.msra.mxu0 0.0
      %653 = vmatpush.xpose.msra.mxu0 0.0
      %654 = vmatpush.xpose.msra.mxu0 0.0
      %655 = vmatpush.xpose.msra.mxu0 0.0
      %656 = vmatpush.xpose.msra.mxu0 0.0
      %657 = vmatpush.xpose.msra.mxu0 0.0
      %658 = vmatpush.xpose.msra.mxu0 0.0
      %659 = vmatpush.xpose.msra.mxu0 0.0
      %660 = vmatpush.xpose.msra.mxu0 0.0
      %661 = vmatpush.xpose.msra.mxu0 0.0
      %662 = vmatpush.xpose.msra.mxu0 0.0
      %663 = vmatpush.xpose.msra.mxu0 0.0
      %664 = vmatpush.xpose.msra.mxu0 %v648
      %665 = vmatpush.xpose.msra.mxu0 %v646
      %666 = vmatmul.f32.gmra.mxu0 %v642
      %v667 = vpop.f32.mrf.mxu0
      %v668 = vadd.f32 0.0, %v667
      %669 = vmatmul.f32.gmra.mxu0 %v644
      %v670 = vpop.f32.mrf.mxu0
      %v671 = vadd.f32 0.0, %v670
      %672 = vdwg.mxu0
      %675 = vrot.lane.b32.xlu0 %v587, 96
      %v676 = vpop.permute.xlu0 %675
      %677 = vrot.lane.b32.xlu0 %v590, 96
      %v678 = vpop.permute.xlu0 %677
      %v679 = vsel %vm604, %v587, 0
      %v681 = vsel %vm604, %v590, 0
      %v683 = vsel %vm604, %v676, 0
      %v685 = vsel %vm604, %v678, 0
      %687 = vmatpush.xpose.msra.mxu0 0.0
      %688 = vmatpush.xpose.msra.mxu0 0.0
      %689 = vmatpush.xpose.msra.mxu0 0.0
      %690 = vmatpush.xpose.msra.mxu0 0.0
      %691 = vmatpush.xpose.msra.mxu0 0.0
      %692 = vmatpush.xpose.msra.mxu0 0.0
      %693 = vmatpush.xpose.msra.mxu0 0.0
      %694 = vmatpush.xpose.msra.mxu0 0.0
      %695 = vmatpush.xpose.msra.mxu0 0.0
      %696 = vmatpush.xpose.msra.mxu0 0.0
      %697 = vmatpush.xpose.msra.mxu0 0.0
      %698 = vmatpush.xpose.msra.mxu0 0.0
      %699 = vmatpush.xpose.msra.mxu0 0.0
      %700 = vmatpush.xpose.msra.mxu0 0.0
      %701 = vmatpush.xpose.msra.mxu0 %v685
      %702 = vmatpush.xpose.msra.mxu0 %v683
      %703 = vmatmul.f32.gmra.mxu0 %v679
      %v704 = vpop.f32.mrf.mxu0
      %v705 = vadd.f32 0.0, %v704
      %706 = vmatmul.f32.gmra.mxu0 %v681
      %v707 = vpop.f32.mrf.mxu0
      %v708 = vadd.f32 0.0, %v707
      %709 = vdwg.mxu0
      %712 = vrot.lane.b32.xlu0 %v593, 96
      %v713 = vpop.permute.xlu0 %712
      %714 = vrot.lane.b32.xlu0 %v596, 96
      %v715 = vpop.permute.xlu0 %714
      %v716 = vsel %vm604, %v593, 0
      %v718 = vsel %vm604, %v596, 0
      %v720 = vsel %vm604, %v713, 0
      %v722 = vsel %vm604, %v715, 0
      %724 = vmatpush.xpose.msra.mxu0 0.0
      %725 = vmatpush.xpose.msra.mxu0 0.0
      %726 = vmatpush.xpose.msra.mxu0 0.0
      %727 = vmatpush.xpose.msra.mxu0 0.0
      %728 = vmatpush.xpose.msra.mxu0 0.0
      %729 = vmatpush.xpose.msra.mxu0 0.0
      %730 = vmatpush.xpose.msra.mxu0 0.0
      %731 = vmatpush.xpose.msra.mxu0 0.0
      %732 = vmatpush.xpose.msra.mxu0 0.0
      %733 = vmatpush.xpose.msra.mxu0 0.0
      %734 = vmatpush.xpose.msra.mxu0 0.0
      %735 = vmatpush.xpose.msra.mxu0 0.0
      %736 = vmatpush.xpose.msra.mxu0 0.0
      %737 = vmatpush.xpose.msra.mxu0 0.0
      %738 = vmatpush.xpose.msra.mxu0 %v722
      %739 = vmatpush.xpose.msra.mxu0 %v720
      %740 = vmatmul.f32.gmra.mxu0 %v716
      %v741 = vpop.f32.mrf.mxu0
      %v742 = vadd.f32 0.0, %v741
      %743 = vmatmul.f32.gmra.mxu0 %v718
      %v744 = vpop.f32.mrf.mxu0
      %v745 = vadd.f32 0.0, %v744
      %746 = vdwg.mxu0
      %v747 = vld [vmem:[%s5] sm:$0xff]
      %v748 = vld [vmem:[%s5 + $0x8] sm:$0xff]
      %v749 = vld [vmem:[%s5 + $0x10] sm:$0xff]
      %v750 = vld [vmem:[%s5 + $0x18] sm:$0xff]
      %v751 = vld [vmem:[%s5 + $0x20] sm:$0xff]
      %v752 = vld [vmem:[%s5 + $0x28] sm:$0xff]
      %v753 = vld [vmem:[%s5 + $0x30] sm:$0xff]
      %v754 = vld [vmem:[%s5 + $0x38] sm:$0xff]
      %v755 = vadd.f32 %v631, %v747
      %v756 = vadd.f32 %v634, %v748
      %v757 = vadd.f32 %v668, %v749
      %v758 = vadd.f32 %v671, %v750
      %v759 = vadd.f32 %v705, %v751
      %v760 = vadd.f32 %v708, %v752
      %v761 = vadd.f32 %v742, %v753
      %v762 = vadd.f32 %v745, %v754
      %vm763 = vcmask 130048
      %v764 = vsel %vm763, %v755, -inf
      %765 = vmax.xlane.f32.xlu0 %v764
      %v766 = vpop.xlane.xlu0 %765
      %v767 = vsel %vm763, %v756, -inf
      %768 = vmax.xlane.f32.xlu0 %v767
      %v769 = vpop.xlane.xlu0 %768
      %v770 = vsel %vm763, %v757, -inf
      %771 = vmax.xlane.f32.xlu0 %v770
      %v772 = vpop.xlane.xlu0 %771
      %v773 = vsel %vm763, %v758, -inf
      %774 = vmax.xlane.f32.xlu0 %v773
      %v775 = vpop.xlane.xlu0 %774
      %v776 = vsel %vm763, %v759, -inf
      %777 = vmax.xlane.f32.xlu0 %v776
      %v778 = vpop.xlane.xlu0 %777
      %v779 = vsel %vm763, %v760, -inf
      %780 = vmax.xlane.f32.xlu0 %v779
      %v781 = vpop.xlane.xlu0 %780
      %v782 = vsel %vm763, %v761, -inf
      %783 = vmax.xlane.f32.xlu0 %v782
      %v784 = vpop.xlane.xlu0 %783
      %v785 = vsel %vm763, %v762, -inf
      %786 = vmax.xlane.f32.xlu0 %v785
      %v787 = vpop.xlane.xlu0 %786
      %v788 = vsub.f32 %v755, %v766
      %v789 = vsub.f32 %v756, %v769
      %v790 = vsub.f32 %v757, %v772
      %v791 = vsub.f32 %v758, %v775
      %v792 = vsub.f32 %v759, %v778
      %v793 = vsub.f32 %v760, %v781
      %v794 = vsub.f32 %v761, %v784
      %v795 = vsub.f32 %v762, %v787
      %v796 = vmul.f32 %v788, 1.442695
      %v797 = vpow.pop %v796
      %v798 = vmul.f32 %v789, 1.442695
      %v799 = vpow.pop %v798
      %v800 = vmul.f32 %v790, 1.442695
      %v801 = vpow.pop %v800
      %v802 = vmul.f32 %v791, 1.442695
      %v803 = vpow.pop %v802
      %v804 = vmul.f32 %v792, 1.442695
      %v805 = vpow.pop %v804
      %v806 = vmul.f32 %v793, 1.442695
      %v807 = vpow.pop %v806
      %v808 = vmul.f32 %v794, 1.442695
      %v809 = vpow.pop %v808
      %v810 = vmul.f32 %v795, 1.442695
      %v811 = vpow.pop %v810
      %v812 = vsel %vm763, %v797, 0.0
      %813 = vadd.xlane.f32.xlu0 %v812
      %v814 = vpop.xlane.xlu0 %813
      %v815 = vsel %vm763, %v799, 0.0
      %816 = vadd.xlane.f32.xlu0 %v815
      %v817 = vpop.xlane.xlu0 %816
      %v818 = vsel %vm763, %v801, 0.0
      %819 = vadd.xlane.f32.xlu0 %v818
      %v820 = vpop.xlane.xlu0 %819
      %v821 = vsel %vm763, %v803, 0.0
      %822 = vadd.xlane.f32.xlu0 %v821
      %v823 = vpop.xlane.xlu0 %822
      %v824 = vsel %vm763, %v805, 0.0
      %825 = vadd.xlane.f32.xlu0 %v824
      %v826 = vpop.xlane.xlu0 %825
      %v827 = vsel %vm763, %v807, 0.0
      %828 = vadd.xlane.f32.xlu0 %v827
      %v829 = vpop.xlane.xlu0 %828
      %v830 = vsel %vm763, %v809, 0.0
      %831 = vadd.xlane.f32.xlu0 %v830
      %v832 = vpop.xlane.xlu0 %831
      %v833 = vsel %vm763, %v811, 0.0
      %834 = vadd.xlane.f32.xlu0 %v833
      %v835 = vpop.xlane.xlu0 %834
      %v836 = vrcp.pop %v814
      %v837 = vrcp.pop %v817
      %v838 = vrcp.pop %v820
      %v839 = vrcp.pop %v823
      %v840 = vrcp.pop %v826
      %v841 = vrcp.pop %v829
      %v842 = vrcp.pop %v832
      %v843 = vrcp.pop %v835
      %v844 = vmul.f32 %v797, %v836
      %v845 = vmul.f32 %v799, %v837
      %v846 = vmul.f32 %v801, %v838
      %v847 = vmul.f32 %v803, %v839
      %v848 = vmul.f32 %v805, %v840
      %v849 = vmul.f32 %v807, %v841
      %v850 = vmul.f32 %v809, %v842
      %v851 = vmul.f32 %v811, %v843
      %852 = vrot.lane.b32.xlu0 %v575, 64
      %v853 = vpop.permute.xlu0 %852
      %854 = vrot.lane.b32.xlu0 %v578, 64
      %v855 = vpop.permute.xlu0 %854
      %v859 = vsel %vm763, %v844, 0
      %v862 = vsel %vm763, %v845, 0
      %864 = vmatpush.msra.mxu0 0.0
      %865 = vmatpush.msra.mxu0 0.0
      %866 = vmatpush.msra.mxu0 0.0
      %867 = vmatpush.msra.mxu0 0.0
      %868 = vmatpush.msra.mxu0 0.0
      %869 = vmatpush.msra.mxu0 0.0
      %870 = vmatpush.msra.mxu0 0.0
      %871 = vmatpush.msra.mxu0 0.0
      %872 = vmatpush.msra.mxu0 0.0
      %873 = vmatpush.msra.mxu0 0.0
      %874 = vmatpush.msra.mxu0 0.0
      %875 = vmatpush.msra.mxu0 0.0
      %876 = vmatpush.msra.mxu0 0.0
      %877 = vmatpush.msra.mxu0 0.0
      %878 = vmatpush.msra.mxu0 %v855
      %879 = vmatpush.msra.mxu0 %v853
      %880 = vmatmul.f32.gmra.mxu0 %v859
      %v881 = vpop.f32.mrf.mxu0
      %v882 = vadd.f32 0.0, %v881
      %883 = vmatmul.f32.gmra.mxu0 %v862
      %v884 = vpop.f32.mrf.mxu0
      %v885 = vadd.f32 0.0, %v884
      %886 = vdwg.mxu0
      %887 = vrot.lane.b32.xlu0 %v581, 64
      %v888 = vpop.permute.xlu0 %887
      %889 = vrot.lane.b32.xlu0 %v584, 64
      %v890 = vpop.permute.xlu0 %889
      %v894 = vsel %vm763, %v846, 0
      %v897 = vsel %vm763, %v847, 0
      %899 = vmatpush.msra.mxu0 0.0
      %900 = vmatpush.msra.mxu0 0.0
      %901 = vmatpush.msra.mxu0 0.0
      %902 = vmatpush.msra.mxu0 0.0
      %903 = vmatpush.msra.mxu0 0.0
      %904 = vmatpush.msra.mxu0 0.0
      %905 = vmatpush.msra.mxu0 0.0
      %906 = vmatpush.msra.mxu0 0.0
      %907 = vmatpush.msra.mxu0 0.0
      %908 = vmatpush.msra.mxu0 0.0
      %909 = vmatpush.msra.mxu0 0.0
      %910 = vmatpush.msra.mxu0 0.0
      %911 = vmatpush.msra.mxu0 0.0
      %912 = vmatpush.msra.mxu0 0.0
      %913 = vmatpush.msra.mxu0 %v890
      %914 = vmatpush.msra.mxu0 %v888
      %915 = vmatmul.f32.gmra.mxu0 %v894
      %v916 = vpop.f32.mrf.mxu0
      %v917 = vadd.f32 0.0, %v916
      %918 = vmatmul.f32.gmra.mxu0 %v897
      %v919 = vpop.f32.mrf.mxu0
      %v920 = vadd.f32 0.0, %v919
      %921 = vdwg.mxu0
      %922 = vrot.lane.b32.xlu0 %v587, 64
      %v923 = vpop.permute.xlu0 %922
      %924 = vrot.lane.b32.xlu0 %v590, 64
      %v925 = vpop.permute.xlu0 %924
      %v929 = vsel %vm763, %v848, 0
      %v932 = vsel %vm763, %v849, 0
      %934 = vmatpush.msra.mxu0 0.0
      %935 = vmatpush.msra.mxu0 0.0
      %936 = vmatpush.msra.mxu0 0.0
      %937 = vmatpush.msra.mxu0 0.0
      %938 = vmatpush.msra.mxu0 0.0
      %939 = vmatpush.msra.mxu0 0.0
      %940 = vmatpush.msra.mxu0 0.0
      %941 = vmatpush.msra.mxu0 0.0
      %942 = vmatpush.msra.mxu0 0.0
      %943 = vmatpush.msra.mxu0 0.0
      %944 = vmatpush.msra.mxu0 0.0
      %945 = vmatpush.msra.mxu0 0.0
      %946 = vmatpush.msra.mxu0 0.0
      %947 = vmatpush.msra.mxu0 0.0
      %948 = vmatpush.msra.mxu0 %v925
      %949 = vmatpush.msra.mxu0 %v923
      %950 = vmatmul.f32.gmra.mxu0 %v929
      %v951 = vpop.f32.mrf.mxu0
      %v952 = vadd.f32 0.0, %v951
      %953 = vmatmul.f32.gmra.mxu0 %v932
      %v954 = vpop.f32.mrf.mxu0
      %v955 = vadd.f32 0.0, %v954
      %956 = vdwg.mxu0
      %957 = vrot.lane.b32.xlu0 %v593, 64
      %v958 = vpop.permute.xlu0 %957
      %959 = vrot.lane.b32.xlu0 %v596, 64
      %v960 = vpop.permute.xlu0 %959
      %v964 = vsel %vm763, %v850, 0
      %v967 = vsel %vm763, %v851, 0
      %969 = vmatpush.msra.mxu0 0.0
      %970 = vmatpush.msra.mxu0 0.0
      %971 = vmatpush.msra.mxu0 0.0
      %972 = vmatpush.msra.mxu0 0.0
      %973 = vmatpush.msra.mxu0 0.0
      %974 = vmatpush.msra.mxu0 0.0
      %975 = vmatpush.msra.mxu0 0.0
      %976 = vmatpush.msra.mxu0 0.0
      %977 = vmatpush.msra.mxu0 0.0
      %978 = vmatpush.msra.mxu0 0.0
      %979 = vmatpush.msra.mxu0 0.0
      %980 = vmatpush.msra.mxu0 0.0
      %981 = vmatpush.msra.mxu0 0.0
      %982 = vmatpush.msra.mxu0 0.0
      %983 = vmatpush.msra.mxu0 %v960
      %984 = vmatpush.msra.mxu0 %v958
      %985 = vmatmul.f32.gmra.mxu0 %v964
      %v986 = vpop.f32.mrf.mxu0
      %v987 = vadd.f32 0.0, %v986
      %988 = vmatmul.f32.gmra.mxu0 %v967
      %v989 = vpop.f32.mrf.mxu0
      %v990 = vadd.f32 0.0, %v989
      %991 = vdwg.mxu0
      %992 = vst.msk [vmem:[#allocation2] sm:$0xff] %vm604, %v882
      %993 = vst.msk [vmem:[#allocation2 + $0x8] sm:$0xff] %vm604, %v885
      %994 = vst.msk [vmem:[#allocation2 + $0x10] sm:$0xff] %vm604, %v917
      %995 = vst.msk [vmem:[#allocation2 + $0x18] sm:$0xff] %vm604, %v920
      %996 = vst.msk [vmem:[#allocation2 + $0x20] sm:$0xff] %vm604, %v952
      %997 = vst.msk [vmem:[#allocation2 + $0x28] sm:$0xff] %vm604, %v955
      %998 = vst.msk [vmem:[#allocation2 + $0x30] sm:$0xff] %vm604, %v987
      %999 = vst.msk [vmem:[#allocation2 + $0x38] sm:$0xff] %vm604, %v990
      %1000 = vrot.lane.b32.xlu0 %v575, 120
      %v1001 = vpop.permute.xlu0 %1000
      %1002 = vrot.lane.b32.xlu0 %v578, 120
      %v1003 = vpop.permute.xlu0 %1002
      %1004 = vrot.lane.b32.xlu0 %v575, 88
      %v1005 = vpop.permute.xlu0 %1004
      %1006 = vrot.lane.b32.xlu0 %v578, 88
      %v1007 = vpop.permute.xlu0 %1006
      %v1008 = vsel %vm604, %v1001, 0
      %v1010 = vsel %vm604, %v1003, 0
      %v1012 = vsel %vm604, %v1005, 0
      %v1014 = vsel %vm604, %v1007, 0
      %1016 = vmatpush.xpose.msra.mxu0 0.0
      %1017 = vmatpush.xpose.msra.mxu0 0.0
      %1018 = vmatpush.xpose.msra.mxu0 0.0
      %1019 = vmatpush.xpose.msra.mxu0 0.0
      %1020 = vmatpush.xpose.msra.mxu0 0.0
      %1021 = vmatpush.xpose.msra.mxu0 0.0
      %1022 = vmatpush.xpose.msra.mxu0 0.0
      %1023 = vmatpush.xpose.msra.mxu0 0.0
      %1024 = vmatpush.xpose.msra.mxu0 0.0
      %1025 = vmatpush.xpose.msra.mxu0 0.0
      %1026 = vmatpush.xpose.msra.mxu0 0.0
      %1027 = vmatpush.xpose.msra.mxu0 0.0
      %1028 = vmatpush.xpose.msra.mxu0 0.0
      %1029 = vmatpush.xpose.msra.mxu0 0.0
      %1030 = vmatpush.xpose.msra.mxu0 %v1014
      %1031 = vmatpush.xpose.msra.mxu0 %v1012
      %1032 = vmatmul.f32.gmra.mxu0 %v1008
      %v1033 = vpop.f32.mrf.mxu0
      %v1034 = vadd.f32 0.0, %v1033
      %1035 = vmatmul.f32.gmra.mxu0 %v1010
      %v1036 = vpop.f32.mrf.mxu0
      %v1037 = vadd.f32 0.0, %v1036
      %1038 = vdwg.mxu0
      %1039 = vrot.lane.b32.xlu0 %v581, 120
      %v1040 = vpop.permute.xlu0 %1039
      %1041 = vrot.lane.b32.xlu0 %v584, 120
      %v1042 = vpop.permute.xlu0 %1041
      %1043 = vrot.lane.b32.xlu0 %v581, 88
      %v1044 = vpop.permute.xlu0 %1043
      %1045 = vrot.lane.b32.xlu0 %v584, 88
      %v1046 = vpop.permute.xlu0 %1045
      %v1047 = vsel %vm604, %v1040, 0
      %v1049 = vsel %vm604, %v1042, 0
      %v1051 = vsel %vm604, %v1044, 0
      %v1053 = vsel %vm604, %v1046, 0
      %1055 = vmatpush.xpose.msra.mxu0 0.0
      %1056 = vmatpush.xpose.msra.mxu0 0.0
      %1057 = vmatpush.xpose.msra.mxu0 0.0
      %1058 = vmatpush.xpose.msra.mxu0 0.0
      %1059 = vmatpush.xpose.msra.mxu0 0.0
      %1060 = vmatpush.xpose.msra.mxu0 0.0
      %1061 = vmatpush.xpose.msra.mxu0 0.0
      %1062 = vmatpush.xpose.msra.mxu0 0.0
      %1063 = vmatpush.xpose.msra.mxu0 0.0
      %1064 = vmatpush.xpose.msra.mxu0 0.0
      %1065 = vmatpush.xpose.msra.mxu0 0.0
      %1066 = vmatpush.xpose.msra.mxu0 0.0
      %1067 = vmatpush.xpose.msra.mxu0 0.0
      %1068 = vmatpush.xpose.msra.mxu0 0.0
      %1069 = vmatpush.xpose.msra.mxu0 %v1053
      %1070 = vmatpush.xpose.msra.mxu0 %v1051
      %1071 = vmatmul.f32.gmra.mxu0 %v1047
      %v1072 = vpop.f32.mrf.mxu0
      %v1073 = vadd.f32 0.0, %v1072
      %1074 = vmatmul.f32.gmra.mxu0 %v1049
      %v1075 = vpop.f32.mrf.mxu0
      %v1076 = vadd.f32 0.0, %v1075
      %1077 = vdwg.mxu0
      %1078 = vrot.lane.b32.xlu0 %v587, 120
      %v1079 = vpop.permute.xlu0 %1078
      %1080 = vrot.lane.b32.xlu0 %v590, 120
      %v1081 = vpop.permute.xlu0 %1080
      %1082 = vrot.lane.b32.xlu0 %v587, 88
      %v1083 = vpop.permute.xlu0 %1082
      %1084 = vrot.lane.b32.xlu0 %v590, 88
      %v1085 = vpop.permute.xlu0 %1084
      %v1086 = vsel %vm604, %v1079, 0
      %v1088 = vsel %vm604, %v1081, 0
      %v1090 = vsel %vm604, %v1083, 0
      %v1092 = vsel %vm604, %v1085, 0
      %1094 = vmatpush.xpose.msra.mxu0 0.0
      %1095 = vmatpush.xpose.msra.mxu0 0.0
      %1096 = vmatpush.xpose.msra.mxu0 0.0
      %1097 = vmatpush.xpose.msra.mxu0 0.0
      %1098 = vmatpush.xpose.msra.mxu0 0.0
      %1099 = vmatpush.xpose.msra.mxu0 0.0
      %1100 = vmatpush.xpose.msra.mxu0 0.0
      %1101 = vmatpush.xpose.msra.mxu0 0.0
      %1102 = vmatpush.xpose.msra.mxu0 0.0
      %1103 = vmatpush.xpose.msra.mxu0 0.0
      %1104 = vmatpush.xpose.msra.mxu0 0.0
      %1105 = vmatpush.xpose.msra.mxu0 0.0
      %1106 = vmatpush.xpose.msra.mxu0 0.0
      %1107 = vmatpush.xpose.msra.mxu0 0.0
      %1108 = vmatpush.xpose.msra.mxu0 %v1092
      %1109 = vmatpush.xpose.msra.mxu0 %v1090
      %1110 = vmatmul.f32.gmra.mxu0 %v1086
      %v1111 = vpop.f32.mrf.mxu0
      %v1112 = vadd.f32 0.0, %v1111
      %1113 = vmatmul.f32.gmra.mxu0 %v1088
      %v1114 = vpop.f32.mrf.mxu0
      %v1115 = vadd.f32 0.0, %v1114
      %1116 = vdwg.mxu0
      %1117 = vrot.lane.b32.xlu0 %v593, 120
      %v1118 = vpop.permute.xlu0 %1117
      %1119 = vrot.lane.b32.xlu0 %v596, 120
      %v1120 = vpop.permute.xlu0 %1119
      %1121 = vrot.lane.b32.xlu0 %v593, 88
      %v1122 = vpop.permute.xlu0 %1121
      %1123 = vrot.lane.b32.xlu0 %v596, 88
      %v1124 = vpop.permute.xlu0 %1123
      %v1125 = vsel %vm604, %v1118, 0
      %v1127 = vsel %vm604, %v1120, 0
      %v1129 = vsel %vm604, %v1122, 0
      %v1131 = vsel %vm604, %v1124, 0
      %1133 = vmatpush.xpose.msra.mxu0 0.0
      %1134 = vmatpush.xpose.msra.mxu0 0.0
      %1135 = vmatpush.xpose.msra.mxu0 0.0
      %1136 = vmatpush.xpose.msra.mxu0 0.0
      %1137 = vmatpush.xpose.msra.mxu0 0.0
      %1138 = vmatpush.xpose.msra.mxu0 0.0
      %1139 = vmatpush.xpose.msra.mxu0 0.0
      %1140 = vmatpush.xpose.msra.mxu0 0.0
      %1141 = vmatpush.xpose.msra.mxu0 0.0
      %1142 = vmatpush.xpose.msra.mxu0 0.0
      %1143 = vmatpush.xpose.msra.mxu0 0.0
      %1144 = vmatpush.xpose.msra.mxu0 0.0
      %1145 = vmatpush.xpose.msra.mxu0 0.0
      %1146 = vmatpush.xpose.msra.mxu0 0.0
      %1147 = vmatpush.xpose.msra.mxu0 %v1131
      %1148 = vmatpush.xpose.msra.mxu0 %v1129
      %1149 = vmatmul.f32.gmra.mxu0 %v1125
      %v1150 = vpop.f32.mrf.mxu0
      %v1151 = vadd.f32 0.0, %v1150
      %1152 = vmatmul.f32.gmra.mxu0 %v1127
      %v1153 = vpop.f32.mrf.mxu0
      %v1154 = vadd.f32 0.0, %v1153
      %1155 = vdwg.mxu0
      %s1156 = scalar_lea.vmem %s5, 64
      %v1157 = vld [vmem:[%s1156] sm:$0xff]
      %v1158 = vld [vmem:[%s1156 + $0x8] sm:$0xff]
      %v1159 = vld [vmem:[%s1156 + $0x10] sm:$0xff]
      %v1160 = vld [vmem:[%s1156 + $0x18] sm:$0xff]
      %v1161 = vld [vmem:[%s1156 + $0x20] sm:$0xff]
      %v1162 = vld [vmem:[%s1156 + $0x28] sm:$0xff]
      %v1163 = vld [vmem:[%s1156 + $0x30] sm:$0xff]
      %v1164 = vld [vmem:[%s1156 + $0x38] sm:$0xff]
      %v1165 = vadd.f32 %v1034, %v1157
      %v1166 = vadd.f32 %v1037, %v1158
      %v1167 = vadd.f32 %v1073, %v1159
      %v1168 = vadd.f32 %v1076, %v1160
      %v1169 = vadd.f32 %v1112, %v1161
      %v1170 = vadd.f32 %v1115, %v1162
      %v1171 = vadd.f32 %v1151, %v1163
      %v1172 = vadd.f32 %v1154, %v1164
      %v1173 = vsel %vm763, %v1165, -inf
      %1174 = vmax.xlane.f32.xlu0 %v1173
      %v1175 = vpop.xlane.xlu0 %1174
      %v1176 = vsel %vm763, %v1166, -inf
      %1177 = vmax.xlane.f32.xlu0 %v1176
      %v1178 = vpop.xlane.xlu0 %1177
      %v1179 = vsel %vm763, %v1167, -inf
      %1180 = vmax.xlane.f32.xlu0 %v1179
      %v1181 = vpop.xlane.xlu0 %1180
      %v1182 = vsel %vm763, %v1168, -inf
      %1183 = vmax.xlane.f32.xlu0 %v1182
      %v1184 = vpop.xlane.xlu0 %1183
      %v1185 = vsel %vm763, %v1169, -inf
      %1186 = vmax.xlane.f32.xlu0 %v1185
      %v1187 = vpop.xlane.xlu0 %1186
      %v1188 = vsel %vm763, %v1170, -inf
      %1189 = vmax.xlane.f32.xlu0 %v1188
      %v1190 = vpop.xlane.xlu0 %1189
      %v1191 = vsel %vm763, %v1171, -inf
      %1192 = vmax.xlane.f32.xlu0 %v1191
      %v1193 = vpop.xlane.xlu0 %1192
      %v1194 = vsel %vm763, %v1172, -inf
      %1195 = vmax.xlane.f32.xlu0 %v1194
      %v1196 = vpop.xlane.xlu0 %1195
      %v1197 = vsub.f32 %v1165, %v1175
      %v1198 = vsub.f32 %v1166, %v1178
      %v1199 = vsub.f32 %v1167, %v1181
      %v1200 = vsub.f32 %v1168, %v1184
      %v1201 = vsub.f32 %v1169, %v1187
      %v1202 = vsub.f32 %v1170, %v1190
      %v1203 = vsub.f32 %v1171, %v1193
      %v1204 = vsub.f32 %v1172, %v1196
      %v1205 = vmul.f32 %v1197, 1.442695
      %v1206 = vpow.pop %v1205
      %v1207 = vmul.f32 %v1198, 1.442695
      %v1208 = vpow.pop %v1207
      %v1209 = vmul.f32 %v1199, 1.442695
      %v1210 = vpow.pop %v1209
      %v1211 = vmul.f32 %v1200, 1.442695
      %v1212 = vpow.pop %v1211
      %v1213 = vmul.f32 %v1201, 1.442695
      %v1214 = vpow.pop %v1213
      %v1215 = vmul.f32 %v1202, 1.442695
      %v1216 = vpow.pop %v1215
      %v1217 = vmul.f32 %v1203, 1.442695
      %v1218 = vpow.pop %v1217
      %v1219 = vmul.f32 %v1204, 1.442695
      %v1220 = vpow.pop %v1219
      %v1221 = vsel %vm763, %v1206, 0.0
      %1222 = vadd.xlane.f32.xlu0 %v1221
      %v1223 = vpop.xlane.xlu0 %1222
      %v1224 = vsel %vm763, %v1208, 0.0
      %1225 = vadd.xlane.f32.xlu0 %v1224
      %v1226 = vpop.xlane.xlu0 %1225
      %v1227 = vsel %vm763, %v1210, 0.0
      %1228 = vadd.xlane.f32.xlu0 %v1227
      %v1229 = vpop.xlane.xlu0 %1228
      %v1230 = vsel %vm763, %v1212, 0.0
      %1231 = vadd.xlane.f32.xlu0 %v1230
      %v1232 = vpop.xlane.xlu0 %1231
      %v1233 = vsel %vm763, %v1214, 0.0
      %1234 = vadd.xlane.f32.xlu0 %v1233
      %v1235 = vpop.xlane.xlu0 %1234
      %v1236 = vsel %vm763, %v1216, 0.0
      %1237 = vadd.xlane.f32.xlu0 %v1236
      %v1238 = vpop.xlane.xlu0 %1237
      %v1239 = vsel %vm763, %v1218, 0.0
      %1240 = vadd.xlane.f32.xlu0 %v1239
      %v1241 = vpop.xlane.xlu0 %1240
      %v1242 = vsel %vm763, %v1220, 0.0
      %1243 = vadd.xlane.f32.xlu0 %v1242
      %v1244 = vpop.xlane.xlu0 %1243
      %v1245 = vrcp.pop %v1223
      %v1246 = vrcp.pop %v1226
      %v1247 = vrcp.pop %v1229
      %v1248 = vrcp.pop %v1232
      %v1249 = vrcp.pop %v1235
      %v1250 = vrcp.pop %v1238
      %v1251 = vrcp.pop %v1241
      %v1252 = vrcp.pop %v1244
      %v1253 = vmul.f32 %v1206, %v1245
      %v1254 = vmul.f32 %v1208, %v1246
      %v1255 = vmul.f32 %v1210, %v1247
      %v1256 = vmul.f32 %v1212, %v1248
      %v1257 = vmul.f32 %v1214, %v1249
      %v1258 = vmul.f32 %v1216, %v1250
      %v1259 = vmul.f32 %v1218, %v1251
      %v1260 = vmul.f32 %v1220, %v1252
      %1261 = vrot.lane.b32.xlu0 %v575, 56
      %v1262 = vpop.permute.xlu0 %1261
      %1263 = vrot.lane.b32.xlu0 %v578, 56
      %v1264 = vpop.permute.xlu0 %1263
      %v1268 = vsel %vm763, %v1253, 0
      %v1271 = vsel %vm763, %v1254, 0
      %1273 = vmatpush.msra.mxu0 0.0
      %1274 = vmatpush.msra.mxu0 0.0
      %1275 = vmatpush.msra.mxu0 0.0
      %1276 = vmatpush.msra.mxu0 0.0
      %1277 = vmatpush.msra.mxu0 0.0
      %1278 = vmatpush.msra.mxu0 0.0
      %1279 = vmatpush.msra.mxu0 0.0
      %1280 = vmatpush.msra.mxu0 0.0
      %1281 = vmatpush.msra.mxu0 0.0
      %1282 = vmatpush.msra.mxu0 0.0
      %1283 = vmatpush.msra.mxu0 0.0
      %1284 = vmatpush.msra.mxu0 0.0
      %1285 = vmatpush.msra.mxu0 0.0
      %1286 = vmatpush.msra.mxu0 0.0
      %1287 = vmatpush.msra.mxu0 %v1264
      %1288 = vmatpush.msra.mxu0 %v1262
      %1289 = vmatmul.f32.gmra.mxu0 %v1268
      %v1290 = vpop.f32.mrf.mxu0
      %v1291 = vadd.f32 0.0, %v1290
      %1292 = vmatmul.f32.gmra.mxu0 %v1271
      %v1293 = vpop.f32.mrf.mxu0
      %v1294 = vadd.f32 0.0, %v1293
      %1295 = vdwg.mxu0
      %1296 = vrot.lane.b32.xlu0 %v581, 56
      %v1297 = vpop.permute.xlu0 %1296
      %1298 = vrot.lane.b32.xlu0 %v584, 56
      %v1299 = vpop.permute.xlu0 %1298
      %v1303 = vsel %vm763, %v1255, 0
      %v1306 = vsel %vm763, %v1256, 0
      %1308 = vmatpush.msra.mxu0 0.0
      %1309 = vmatpush.msra.mxu0 0.0
      %1310 = vmatpush.msra.mxu0 0.0
      %1311 = vmatpush.msra.mxu0 0.0
      %1312 = vmatpush.msra.mxu0 0.0
      %1313 = vmatpush.msra.mxu0 0.0
      %1314 = vmatpush.msra.mxu0 0.0
      %1315 = vmatpush.msra.mxu0 0.0
      %1316 = vmatpush.msra.mxu0 0.0
      %1317 = vmatpush.msra.mxu0 0.0
      %1318 = vmatpush.msra.mxu0 0.0
      %1319 = vmatpush.msra.mxu0 0.0
      %1320 = vmatpush.msra.mxu0 0.0
      %1321 = vmatpush.msra.mxu0 0.0
      %1322 = vmatpush.msra.mxu0 %v1299
      %1323 = vmatpush.msra.mxu0 %v1297
      %1324 = vmatmul.f32.gmra.mxu0 %v1303
      %v1325 = vpop.f32.mrf.mxu0
      %v1326 = vadd.f32 0.0, %v1325
      %1327 = vmatmul.f32.gmra.mxu0 %v1306
      %v1328 = vpop.f32.mrf.mxu0
      %v1329 = vadd.f32 0.0, %v1328
      %1330 = vdwg.mxu0
      %1331 = vrot.lane.b32.xlu0 %v587, 56
      %v1332 = vpop.permute.xlu0 %1331
      %1333 = vrot.lane.b32.xlu0 %v590, 56
      %v1334 = vpop.permute.xlu0 %1333
      %v1338 = vsel %vm763, %v1257, 0
      %v1341 = vsel %vm763, %v1258, 0
      %1343 = vmatpush.msra.mxu0 0.0
      %1344 = vmatpush.msra.mxu0 0.0
      %1345 = vmatpush.msra.mxu0 0.0
      %1346 = vmatpush.msra.mxu0 0.0
      %1347 = vmatpush.msra.mxu0 0.0
      %1348 = vmatpush.msra.mxu0 0.0
      %1349 = vmatpush.msra.mxu0 0.0
      %1350 = vmatpush.msra.mxu0 0.0
      %1351 = vmatpush.msra.mxu0 0.0
      %1352 = vmatpush.msra.mxu0 0.0
      %1353 = vmatpush.msra.mxu0 0.0
      %1354 = vmatpush.msra.mxu0 0.0
      %1355 = vmatpush.msra.mxu0 0.0
      %1356 = vmatpush.msra.mxu0 0.0
      %1357 = vmatpush.msra.mxu0 %v1334
      %1358 = vmatpush.msra.mxu0 %v1332
      %1359 = vmatmul.f32.gmra.mxu0 %v1338
      %v1360 = vpop.f32.mrf.mxu0
      %v1361 = vadd.f32 0.0, %v1360
      %1362 = vmatmul.f32.gmra.mxu0 %v1341
      %v1363 = vpop.f32.mrf.mxu0
      %v1364 = vadd.f32 0.0, %v1363
      %1365 = vdwg.mxu0
      %1366 = vrot.lane.b32.xlu0 %v593, 56
      %v1367 = vpop.permute.xlu0 %1366
      %1368 = vrot.lane.b32.xlu0 %v596, 56
      %v1369 = vpop.permute.xlu0 %1368
      %v1373 = vsel %vm763, %v1259, 0
      %v1376 = vsel %vm763, %v1260, 0
      %1378 = vmatpush.msra.mxu0 0.0
      %1379 = vmatpush.msra.mxu0 0.0
      %1380 = vmatpush.msra.mxu0 0.0
      %1381 = vmatpush.msra.mxu0 0.0
      %1382 = vmatpush.msra.mxu0 0.0
      %1383 = vmatpush.msra.mxu0 0.0
      %1384 = vmatpush.msra.mxu0 0.0
      %1385 = vmatpush.msra.mxu0 0.0
      %1386 = vmatpush.msra.mxu0 0.0
      %1387 = vmatpush.msra.mxu0 0.0
      %1388 = vmatpush.msra.mxu0 0.0
      %1389 = vmatpush.msra.mxu0 0.0
      %1390 = vmatpush.msra.mxu0 0.0
      %1391 = vmatpush.msra.mxu0 0.0
      %1392 = vmatpush.msra.mxu0 %v1369
      %1393 = vmatpush.msra.mxu0 %v1367
      %1394 = vmatmul.f32.gmra.mxu0 %v1373
      %v1395 = vpop.f32.mrf.mxu0
      %v1396 = vadd.f32 0.0, %v1395
      %1397 = vmatmul.f32.gmra.mxu0 %v1376
      %v1398 = vpop.f32.mrf.mxu0
      %v1399 = vadd.f32 0.0, %v1398
      %1400 = vdwg.mxu0
      %1409 = vrot.lane.b32.xlu0 %v1291, 8
      %v1410 = vpop.permute.xlu0 %1409
      %1411 = vrot.lane.b32.xlu0 %v1294, 8
      %v1412 = vpop.permute.xlu0 %1411
      %1413 = vrot.lane.b32.xlu0 %v1326, 8
      %v1414 = vpop.permute.xlu0 %1413
      %1415 = vrot.lane.b32.xlu0 %v1329, 8
      %v1416 = vpop.permute.xlu0 %1415
      %1417 = vrot.lane.b32.xlu0 %v1361, 8
      %v1418 = vpop.permute.xlu0 %1417
      %1419 = vrot.lane.b32.xlu0 %v1364, 8
      %v1420 = vpop.permute.xlu0 %1419
      %1421 = vrot.lane.b32.xlu0 %v1396, 8
      %v1422 = vpop.permute.xlu0 %1421
      %1423 = vrot.lane.b32.xlu0 %v1399, 8
      %v1424 = vpop.permute.xlu0 %1423
      %vm1433 = vcmask 130112
      %1434 = vst.msk [vmem:[#allocation2] sm:$0xff] %vm1433, %v1410
      %1435 = vst.msk [vmem:[#allocation2 + $0x8] sm:$0xff] %vm1433, %v1412
      %1436 = vst.msk [vmem:[#allocation2 + $0x10] sm:$0xff] %vm1433, %v1414
      %1437 = vst.msk [vmem:[#allocation2 + $0x18] sm:$0xff] %vm1433, %v1416
      %1438 = vst.msk [vmem:[#allocation2 + $0x20] sm:$0xff] %vm1433, %v1418
      %1439 = vst.msk [vmem:[#allocation2 + $0x28] sm:$0xff] %vm1433, %v1420
      %1440 = vst.msk [vmem:[#allocation2 + $0x30] sm:$0xff] %vm1433, %v1422
      %1441 = vst.msk [vmem:[#allocation2 + $0x38] sm:$0xff] %vm1433, %v1424
      %1442 = vrot.lane.b32.xlu0 %v575, 112
      %v1443 = vpop.permute.xlu0 %1442
      %1444 = vrot.lane.b32.xlu0 %v578, 112
      %v1445 = vpop.permute.xlu0 %1444
      %1446 = vrot.lane.b32.xlu0 %v575, 80
      %v1447 = vpop.permute.xlu0 %1446
      %1448 = vrot.lane.b32.xlu0 %v578, 80
      %v1449 = vpop.permute.xlu0 %1448
      %v1450 = vsel %vm604, %v1443, 0
      %v1452 = vsel %vm604, %v1445, 0
      %v1454 = vsel %vm604, %v1447, 0
      %v1456 = vsel %vm604, %v1449, 0
      %1458 = vmatpush.xpose.msra.mxu0 0.0
      %1459 = vmatpush.xpose.msra.mxu0 0.0
      %1460 = vmatpush.xpose.msra.mxu0 0.0
      %1461 = vmatpush.xpose.msra.mxu0 0.0
      %1462 = vmatpush.xpose.msra.mxu0 0.0
      %1463 = vmatpush.xpose.msra.mxu0 0.0
      %1464 = vmatpush.xpose.msra.mxu0 0.0
      %1465 = vmatpush.xpose.msra.mxu0 0.0
      %1466 = vmatpush.xpose.msra.mxu0 0.0
      %1467 = vmatpush.xpose.msra.mxu0 0.0
      %1468 = vmatpush.xpose.msra.mxu0 0.0
      %1469 = vmatpush.xpose.msra.mxu0 0.0
      %1470 = vmatpush.xpose.msra.mxu0 0.0
      %1471 = vmatpush.xpose.msra.mxu0 0.0
      %1472 = vmatpush.xpose.msra.mxu0 %v1456
      %1473 = vmatpush.xpose.msra.mxu0 %v1454
      %1474 = vmatmul.f32.gmra.mxu0 %v1450
      %v1475 = vpop.f32.mrf.mxu0
      %v1476 = vadd.f32 0.0, %v1475
      %1477 = vmatmul.f32.gmra.mxu0 %v1452
      %v1478 = vpop.f32.mrf.mxu0
      %v1479 = vadd.f32 0.0, %v1478
      %1480 = vdwg.mxu0
      %1481 = vrot.lane.b32.xlu0 %v581, 112
      %v1482 = vpop.permute.xlu0 %1481
      %1483 = vrot.lane.b32.xlu0 %v584, 112
      %v1484 = vpop.permute.xlu0 %1483
      %1485 = vrot.lane.b32.xlu0 %v581, 80
      %v1486 = vpop.permute.xlu0 %1485
      %1487 = vrot.lane.b32.xlu0 %v584, 80
      %v1488 = vpop.permute.xlu0 %1487
      %v1489 = vsel %vm604, %v1482, 0
      %v1491 = vsel %vm604, %v1484, 0
      %v1493 = vsel %vm604, %v1486, 0
      %v1495 = vsel %vm604, %v1488, 0
      %1497 = vmatpush.xpose.msra.mxu0 0.0
      %1498 = vmatpush.xpose.msra.mxu0 0.0
      %1499 = vmatpush.xpose.msra.mxu0 0.0
      %1500 = vmatpush.xpose.msra.mxu0 0.0
      %1501 = vmatpush.xpose.msra.mxu0 0.0
      %1502 = vmatpush.xpose.msra.mxu0 0.0
      %1503 = vmatpush.xpose.msra.mxu0 0.0
      %1504 = vmatpush.xpose.msra.mxu0 0.0
      %1505 = vmatpush.xpose.msra.mxu0 0.0
      %1506 = vmatpush.xpose.msra.mxu0 0.0
      %1507 = vmatpush.xpose.msra.mxu0 0.0
      %1508 = vmatpush.xpose.msra.mxu0 0.0
      %1509 = vmatpush.xpose.msra.mxu0 0.0
      %1510 = vmatpush.xpose.msra.mxu0 0.0
      %1511 = vmatpush.xpose.msra.mxu0 %v1495
      %1512 = vmatpush.xpose.msra.mxu0 %v1493
      %1513 = vmatmul.f32.gmra.mxu0 %v1489
      %v1514 = vpop.f32.mrf.mxu0
      %v1515 = vadd.f32 0.0, %v1514
      %1516 = vmatmul.f32.gmra.mxu0 %v1491
      %v1517 = vpop.f32.mrf.mxu0
      %v1518 = vadd.f32 0.0, %v1517
      %1519 = vdwg.mxu0
      %1520 = vrot.lane.b32.xlu0 %v587, 112
      %v1521 = vpop.permute.xlu0 %1520
      %1522 = vrot.lane.b32.xlu0 %v590, 112
      %v1523 = vpop.permute.xlu0 %1522
      %1524 = vrot.lane.b32.xlu0 %v587, 80
      %v1525 = vpop.permute.xlu0 %1524
      %1526 = vrot.lane.b32.xlu0 %v590, 80
      %v1527 = vpop.permute.xlu0 %1526
      %v1528 = vsel %vm604, %v1521, 0
      %v1530 = vsel %vm604, %v1523, 0
      %v1532 = vsel %vm604, %v1525, 0
      %v1534 = vsel %vm604, %v1527, 0
      %1536 = vmatpush.xpose.msra.mxu0 0.0
      %1537 = vmatpush.xpose.msra.mxu0 0.0
      %1538 = vmatpush.xpose.msra.mxu0 0.0
      %1539 = vmatpush.xpose.msra.mxu0 0.0
      %1540 = vmatpush.xpose.msra.mxu0 0.0
      %1541 = vmatpush.xpose.msra.mxu0 0.0
      %1542 = vmatpush.xpose.msra.mxu0 0.0
      %1543 = vmatpush.xpose.msra.mxu0 0.0
      %1544 = vmatpush.xpose.msra.mxu0 0.0
      %1545 = vmatpush.xpose.msra.mxu0 0.0
      %1546 = vmatpush.xpose.msra.mxu0 0.0
      %1547 = vmatpush.xpose.msra.mxu0 0.0
      %1548 = vmatpush.xpose.msra.mxu0 0.0
      %1549 = vmatpush.xpose.msra.mxu0 0.0
      %1550 = vmatpush.xpose.msra.mxu0 %v1534
      %1551 = vmatpush.xpose.msra.mxu0 %v1532
      %1552 = vmatmul.f32.gmra.mxu0 %v1528
      %v1553 = vpop.f32.mrf.mxu0
      %v1554 = vadd.f32 0.0, %v1553
      %1555 = vmatmul.f32.gmra.mxu0 %v1530
      %v1556 = vpop.f32.mrf.mxu0
      %v1557 = vadd.f32 0.0, %v1556
      %1558 = vdwg.mxu0
      %1559 = vrot.lane.b32.xlu0 %v593, 112
      %v1560 = vpop.permute.xlu0 %1559
      %1561 = vrot.lane.b32.xlu0 %v596, 112
      %v1562 = vpop.permute.xlu0 %1561
      %1563 = vrot.lane.b32.xlu0 %v593, 80
      %v1564 = vpop.permute.xlu0 %1563
      %1565 = vrot.lane.b32.xlu0 %v596, 80
      %v1566 = vpop.permute.xlu0 %1565
      %v1567 = vsel %vm604, %v1560, 0
      %v1569 = vsel %vm604, %v1562, 0
      %v1571 = vsel %vm604, %v1564, 0
      %v1573 = vsel %vm604, %v1566, 0
      %1575 = vmatpush.xpose.msra.mxu0 0.0
      %1576 = vmatpush.xpose.msra.mxu0 0.0
      %1577 = vmatpush.xpose.msra.mxu0 0.0
      %1578 = vmatpush.xpose.msra.mxu0 0.0
      %1579 = vmatpush.xpose.msra.mxu0 0.0
      %1580 = vmatpush.xpose.msra.mxu0 0.0
      %1581 = vmatpush.xpose.msra.mxu0 0.0
      %1582 = vmatpush.xpose.msra.mxu0 0.0
      %1583 = vmatpush.xpose.msra.mxu0 0.0
      %1584 = vmatpush.xpose.msra.mxu0 0.0
      %1585 = vmatpush.xpose.msra.mxu0 0.0
      %1586 = vmatpush.xpose.msra.mxu0 0.0
      %1587 = vmatpush.xpose.msra.mxu0 0.0
      %1588 = vmatpush.xpose.msra.mxu0 0.0
      %1589 = vmatpush.xpose.msra.mxu0 %v1573
      %1590 = vmatpush.xpose.msra.mxu0 %v1571
      %1591 = vmatmul.f32.gmra.mxu0 %v1567
      %v1592 = vpop.f32.mrf.mxu0
      %v1593 = vadd.f32 0.0, %v1592
      %1594 = vmatmul.f32.gmra.mxu0 %v1569
      %v1595 = vpop.f32.mrf.mxu0
      %v1596 = vadd.f32 0.0, %v1595
      %1597 = vdwg.mxu0
      %s1598 = scalar_lea.vmem %s5, 128
      %v1599 = vld [vmem:[%s1598] sm:$0xff]
      %v1600 = vld [vmem:[%s1598 + $0x8] sm:$0xff]
      %v1601 = vld [vmem:[%s1598 + $0x10] sm:$0xff]
      %v1602 = vld [vmem:[%s1598 + $0x18] sm:$0xff]
      %v1603 = vld [vmem:[%s1598 + $0x20] sm:$0xff]
      %v1604 = vld [vmem:[%s1598 + $0x28] sm:$0xff]
      %v1605 = vld [vmem:[%s1598 + $0x30] sm:$0xff]
      %v1606 = vld [vmem:[%s1598 + $0x38] sm:$0xff]
      %v1607 = vadd.f32 %v1476, %v1599
      %v1608 = vadd.f32 %v1479, %v1600
      %v1609 = vadd.f32 %v1515, %v1601
      %v1610 = vadd.f32 %v1518, %v1602
      %v1611 = vadd.f32 %v1554, %v1603
      %v1612 = vadd.f32 %v1557, %v1604
      %v1613 = vadd.f32 %v1593, %v1605
      %v1614 = vadd.f32 %v1596, %v1606
      %v1615 = vsel %vm763, %v1607, -inf
      %1616 = vmax.xlane.f32.xlu0 %v1615
      %v1617 = vpop.xlane.xlu0 %1616
      %v1618 = vsel %vm763, %v1608, -inf
      %1619 = vmax.xlane.f32.xlu0 %v1618
      %v1620 = vpop.xlane.xlu0 %1619
      %v1621 = vsel %vm763, %v1609, -inf
      %1622 = vmax.xlane.f32.xlu0 %v1621
      %v1623 = vpop.xlane.xlu0 %1622
      %v1624 = vsel %vm763, %v1610, -inf
      %1625 = vmax.xlane.f32.xlu0 %v1624
      %v1626 = vpop.xlane.xlu0 %1625
      %v1627 = vsel %vm763, %v1611, -inf
      %1628 = vmax.xlane.f32.xlu0 %v1627
      %v1629 = vpop.xlane.xlu0 %1628
      %v1630 = vsel %vm763, %v1612, -inf
      %1631 = vmax.xlane.f32.xlu0 %v1630
      %v1632 = vpop.xlane.xlu0 %1631
      %v1633 = vsel %vm763, %v1613, -inf
      %1634 = vmax.xlane.f32.xlu0 %v1633
      %v1635 = vpop.xlane.xlu0 %1634
      %v1636 = vsel %vm763, %v1614, -inf
      %1637 = vmax.xlane.f32.xlu0 %v1636
      %v1638 = vpop.xlane.xlu0 %1637
      %v1639 = vsub.f32 %v1607, %v1617
      %v1640 = vsub.f32 %v1608, %v1620
      %v1641 = vsub.f32 %v1609, %v1623
      %v1642 = vsub.f32 %v1610, %v1626
      %v1643 = vsub.f32 %v1611, %v1629
      %v1644 = vsub.f32 %v1612, %v1632
      %v1645 = vsub.f32 %v1613, %v1635
      %v1646 = vsub.f32 %v1614, %v1638
      %v1647 = vmul.f32 %v1639, 1.442695
      %v1648 = vpow.pop %v1647
      %v1649 = vmul.f32 %v1640, 1.442695
      %v1650 = vpow.pop %v1649
      %v1651 = vmul.f32 %v1641, 1.442695
      %v1652 = vpow.pop %v1651
      %v1653 = vmul.f32 %v1642, 1.442695
      %v1654 = vpow.pop %v1653
      %v1655 = vmul.f32 %v1643, 1.442695
      %v1656 = vpow.pop %v1655
      %v1657 = vmul.f32 %v1644, 1.442695
      %v1658 = vpow.pop %v1657
      %v1659 = vmul.f32 %v1645, 1.442695
      %v1660 = vpow.pop %v1659
      %v1661 = vmul.f32 %v1646, 1.442695
      %v1662 = vpow.pop %v1661
      %v1663 = vsel %vm763, %v1648, 0.0
      %1664 = vadd.xlane.f32.xlu0 %v1663
      %v1665 = vpop.xlane.xlu0 %1664
      %v1666 = vsel %vm763, %v1650, 0.0
      %1667 = vadd.xlane.f32.xlu0 %v1666
      %v1668 = vpop.xlane.xlu0 %1667
      %v1669 = vsel %vm763, %v1652, 0.0
      %1670 = vadd.xlane.f32.xlu0 %v1669
      %v1671 = vpop.xlane.xlu0 %1670
      %v1672 = vsel %vm763, %v1654, 0.0
      %1673 = vadd.xlane.f32.xlu0 %v1672
      %v1674 = vpop.xlane.xlu0 %1673
      %v1675 = vsel %vm763, %v1656, 0.0
      %1676 = vadd.xlane.f32.xlu0 %v1675
      %v1677 = vpop.xlane.xlu0 %1676
      %v1678 = vsel %vm763, %v1658, 0.0
      %1679 = vadd.xlane.f32.xlu0 %v1678
      %v1680 = vpop.xlane.xlu0 %1679
      %v1681 = vsel %vm763, %v1660, 0.0
      %1682 = vadd.xlane.f32.xlu0 %v1681
      %v1683 = vpop.xlane.xlu0 %1682
      %v1684 = vsel %vm763, %v1662, 0.0
      %1685 = vadd.xlane.f32.xlu0 %v1684
      %v1686 = vpop.xlane.xlu0 %1685
      %v1687 = vrcp.pop %v1665
      %v1688 = vrcp.pop %v1668
      %v1689 = vrcp.pop %v1671
      %v1690 = vrcp.pop %v1674
      %v1691 = vrcp.pop %v1677
      %v1692 = vrcp.pop %v1680
      %v1693 = vrcp.pop %v1683
      %v1694 = vrcp.pop %v1686
      %v1695 = vmul.f32 %v1648, %v1687
      %v1696 = vmul.f32 %v1650, %v1688
      %v1697 = vmul.f32 %v1652, %v1689
      %v1698 = vmul.f32 %v1654, %v1690
      %v1699 = vmul.f32 %v1656, %v1691
      %v1700 = vmul.f32 %v1658, %v1692
      %v1701 = vmul.f32 %v1660, %v1693
      %v1702 = vmul.f32 %v1662, %v1694
      %1703 = vrot.lane.b32.xlu0 %v575, 48
      %v1704 = vpop.permute.xlu0 %1703
      %1705 = vrot.lane.b32.xlu0 %v578, 48
      %v1706 = vpop.permute.xlu0 %1705
      %v1710 = vsel %vm763, %v1695, 0
      %v1713 = vsel %vm763, %v1696, 0
      %1715 = vmatpush.msra.mxu0 0.0
      %1716 = vmatpush.msra.mxu0 0.0
      %1717 = vmatpush.msra.mxu0 0.0
      %1718 = vmatpush.msra.mxu0 0.0
      %1719 = vmatpush.msra.mxu0 0.0
      %1720 = vmatpush.msra.mxu0 0.0
      %1721 = vmatpush.msra.mxu0 0.0
      %1722 = vmatpush.msra.mxu0 0.0
      %1723 = vmatpush.msra.mxu0 0.0
      %1724 = vmatpush.msra.mxu0 0.0
      %1725 = vmatpush.msra.mxu0 0.0
      %1726 = vmatpush.msra.mxu0 0.0
      %1727 = vmatpush.msra.mxu0 0.0
      %1728 = vmatpush.msra.mxu0 0.0
      %1729 = vmatpush.msra.mxu0 %v1706
      %1730 = vmatpush.msra.mxu0 %v1704
      %1731 = vmatmul.f32.gmra.mxu0 %v1710
      %v1732 = vpop.f32.mrf.mxu0
      %v1733 = vadd.f32 0.0, %v1732
      %1734 = vmatmul.f32.gmra.mxu0 %v1713
      %v1735 = vpop.f32.mrf.mxu0
      %v1736 = vadd.f32 0.0, %v1735
      %1737 = vdwg.mxu0
      %1738 = vrot.lane.b32.xlu0 %v581, 48
      %v1739 = vpop.permute.xlu0 %1738
      %1740 = vrot.lane.b32.xlu0 %v584, 48
      %v1741 = vpop.permute.xlu0 %1740
      %v1745 = vsel %vm763, %v1697, 0
      %v1748 = vsel %vm763, %v1698, 0
      %1750 = vmatpush.msra.mxu0 0.0
      %1751 = vmatpush.msra.mxu0 0.0
      %1752 = vmatpush.msra.mxu0 0.0
      %1753 = vmatpush.msra.mxu0 0.0
      %1754 = vmatpush.msra.mxu0 0.0
      %1755 = vmatpush.msra.mxu0 0.0
      %1756 = vmatpush.msra.mxu0 0.0
      %1757 = vmatpush.msra.mxu0 0.0
      %1758 = vmatpush.msra.mxu0 0.0
      %1759 = vmatpush.msra.mxu0 0.0
      %1760 = vmatpush.msra.mxu0 0.0
      %1761 = vmatpush.msra.mxu0 0.0
      %1762 = vmatpush.msra.mxu0 0.0
      %1763 = vmatpush.msra.mxu0 0.0
      %1764 = vmatpush.msra.mxu0 %v1741
      %1765 = vmatpush.msra.mxu0 %v1739
      %1766 = vmatmul.f32.gmra.mxu0 %v1745
      %v1767 = vpop.f32.mrf.mxu0
      %v1768 = vadd.f32 0.0, %v1767
      %1769 = vmatmul.f32.gmra.mxu0 %v1748
      %v1770 = vpop.f32.mrf.mxu0
      %v1771 = vadd.f32 0.0, %v1770
      %1772 = vdwg.mxu0
      %1773 = vrot.lane.b32.xlu0 %v587, 48
      %v1774 = vpop.permute.xlu0 %1773
      %1775 = vrot.lane.b32.xlu0 %v590, 48
      %v1776 = vpop.permute.xlu0 %1775
      %v1780 = vsel %vm763, %v1699, 0
      %v1783 = vsel %vm763, %v1700, 0
      %1785 = vmatpush.msra.mxu0 0.0
      %1786 = vmatpush.msra.mxu0 0.0
      %1787 = vmatpush.msra.mxu0 0.0
      %1788 = vmatpush.msra.mxu0 0.0
      %1789 = vmatpush.msra.mxu0 0.0
      %1790 = vmatpush.msra.mxu0 0.0
      %1791 = vmatpush.msra.mxu0 0.0
      %1792 = vmatpush.msra.mxu0 0.0
      %1793 = vmatpush.msra.mxu0 0.0
      %1794 = vmatpush.msra.mxu0 0.0
      %1795 = vmatpush.msra.mxu0 0.0
      %1796 = vmatpush.msra.mxu0 0.0
      %1797 = vmatpush.msra.mxu0 0.0
      %1798 = vmatpush.msra.mxu0 0.0
      %1799 = vmatpush.msra.mxu0 %v1776
      %1800 = vmatpush.msra.mxu0 %v1774
      %1801 = vmatmul.f32.gmra.mxu0 %v1780
      %v1802 = vpop.f32.mrf.mxu0
      %v1803 = vadd.f32 0.0, %v1802
      %1804 = vmatmul.f32.gmra.mxu0 %v1783
      %v1805 = vpop.f32.mrf.mxu0
      %v1806 = vadd.f32 0.0, %v1805
      %1807 = vdwg.mxu0
      %1808 = vrot.lane.b32.xlu0 %v593, 48
      %v1809 = vpop.permute.xlu0 %1808
      %1810 = vrot.lane.b32.xlu0 %v596, 48
      %v1811 = vpop.permute.xlu0 %1810
      %v1815 = vsel %vm763, %v1701, 0
      %v1818 = vsel %vm763, %v1702, 0
      %1820 = vmatpush.msra.mxu0 0.0
      %1821 = vmatpush.msra.mxu0 0.0
      %1822 = vmatpush.msra.mxu0 0.0
      %1823 = vmatpush.msra.mxu0 0.0
      %1824 = vmatpush.msra.mxu0 0.0
      %1825 = vmatpush.msra.mxu0 0.0
      %1826 = vmatpush.msra.mxu0 0.0
      %1827 = vmatpush.msra.mxu0 0.0
      %1828 = vmatpush.msra.mxu0 0.0
      %1829 = vmatpush.msra.mxu0 0.0
      %1830 = vmatpush.msra.mxu0 0.0
      %1831 = vmatpush.msra.mxu0 0.0
      %1832 = vmatpush.msra.mxu0 0.0
      %1833 = vmatpush.msra.mxu0 0.0
      %1834 = vmatpush.msra.mxu0 %v1811
      %1835 = vmatpush.msra.mxu0 %v1809
      %1836 = vmatmul.f32.gmra.mxu0 %v1815
      %v1837 = vpop.f32.mrf.mxu0
      %v1838 = vadd.f32 0.0, %v1837
      %1839 = vmatmul.f32.gmra.mxu0 %v1818
      %v1840 = vpop.f32.mrf.mxu0
      %v1841 = vadd.f32 0.0, %v1840
      %1842 = vdwg.mxu0
      %1851 = vrot.lane.b32.xlu0 %v1733, 16
      %v1852 = vpop.permute.xlu0 %1851
      %1853 = vrot.lane.b32.xlu0 %v1736, 16
      %v1854 = vpop.permute.xlu0 %1853
      %1855 = vrot.lane.b32.xlu0 %v1768, 16
      %v1856 = vpop.permute.xlu0 %1855
      %1857 = vrot.lane.b32.xlu0 %v1771, 16
      %v1858 = vpop.permute.xlu0 %1857
      %1859 = vrot.lane.b32.xlu0 %v1803, 16
      %v1860 = vpop.permute.xlu0 %1859
      %1861 = vrot.lane.b32.xlu0 %v1806, 16
      %v1862 = vpop.permute.xlu0 %1861
      %1863 = vrot.lane.b32.xlu0 %v1838, 16
      %v1864 = vpop.permute.xlu0 %1863
      %1865 = vrot.lane.b32.xlu0 %v1841, 16
      %v1866 = vpop.permute.xlu0 %1865
      %vm1875 = vcmask 195712
      %1876 = vst.msk [vmem:[#allocation2] sm:$0xff] %vm1875, %v1852
      %1877 = vst.msk [vmem:[#allocation2 + $0x8] sm:$0xff] %vm1875, %v1854
      %1878 = vst.msk [vmem:[#allocation2 + $0x10] sm:$0xff] %vm1875, %v1856
      %1879 = vst.msk [vmem:[#allocation2 + $0x18] sm:$0xff] %vm1875, %v1858
      %1880 = vst.msk [vmem:[#allocation2 + $0x20] sm:$0xff] %vm1875, %v1860
      %1881 = vst.msk [vmem:[#allocation2 + $0x28] sm:$0xff] %vm1875, %v1862
      %1882 = vst.msk [vmem:[#allocation2 + $0x30] sm:$0xff] %vm1875, %v1864
      %1883 = vst.msk [vmem:[#allocation2 + $0x38] sm:$0xff] %vm1875, %v1866
      %1884 = vrot.lane.b32.xlu0 %v575, 104
      %v1885 = vpop.permute.xlu0 %1884
      %1886 = vrot.lane.b32.xlu0 %v578, 104
      %v1887 = vpop.permute.xlu0 %1886
      %1888 = vrot.lane.b32.xlu0 %v575, 72
      %v1889 = vpop.permute.xlu0 %1888
      %1890 = vrot.lane.b32.xlu0 %v578, 72
      %v1891 = vpop.permute.xlu0 %1890
      %v1892 = vsel %vm604, %v1885, 0
      %v1894 = vsel %vm604, %v1887, 0
      %v1896 = vsel %vm604, %v1889, 0
      %v1898 = vsel %vm604, %v1891, 0
      %1900 = vmatpush.xpose.msra.mxu0 0.0
      %1901 = vmatpush.xpose.msra.mxu0 0.0
      %1902 = vmatpush.xpose.msra.mxu0 0.0
      %1903 = vmatpush.xpose.msra.mxu0 0.0
      %1904 = vmatpush.xpose.msra.mxu0 0.0
      %1905 = vmatpush.xpose.msra.mxu0 0.0
      %1906 = vmatpush.xpose.msra.mxu0 0.0
      %1907 = vmatpush.xpose.msra.mxu0 0.0
      %1908 = vmatpush.xpose.msra.mxu0 0.0
      %1909 = vmatpush.xpose.msra.mxu0 0.0
      %1910 = vmatpush.xpose.msra.mxu0 0.0
      %1911 = vmatpush.xpose.msra.mxu0 0.0
      %1912 = vmatpush.xpose.msra.mxu0 0.0
      %1913 = vmatpush.xpose.msra.mxu0 0.0
      %1914 = vmatpush.xpose.msra.mxu0 %v1898
      %1915 = vmatpush.xpose.msra.mxu0 %v1896
      %1916 = vmatmul.f32.gmra.mxu0 %v1892
      %v1917 = vpop.f32.mrf.mxu0
      %v1918 = vadd.f32 0.0, %v1917
      %1919 = vmatmul.f32.gmra.mxu0 %v1894
      %v1920 = vpop.f32.mrf.mxu0
      %v1921 = vadd.f32 0.0, %v1920
      %1922 = vdwg.mxu0
      %1923 = vrot.lane.b32.xlu0 %v581, 104
      %v1924 = vpop.permute.xlu0 %1923
      %1925 = vrot.lane.b32.xlu0 %v584, 104
      %v1926 = vpop.permute.xlu0 %1925
      %1927 = vrot.lane.b32.xlu0 %v581, 72
      %v1928 = vpop.permute.xlu0 %1927
      %1929 = vrot.lane.b32.xlu0 %v584, 72
      %v1930 = vpop.permute.xlu0 %1929
      %v1931 = vsel %vm604, %v1924, 0
      %v1933 = vsel %vm604, %v1926, 0
      %v1935 = vsel %vm604, %v1928, 0
      %v1937 = vsel %vm604, %v1930, 0
      %1939 = vmatpush.xpose.msra.mxu0 0.0
      %1940 = vmatpush.xpose.msra.mxu0 0.0
      %1941 = vmatpush.xpose.msra.mxu0 0.0
      %1942 = vmatpush.xpose.msra.mxu0 0.0
      %1943 = vmatpush.xpose.msra.mxu0 0.0
      %1944 = vmatpush.xpose.msra.mxu0 0.0
      %1945 = vmatpush.xpose.msra.mxu0 0.0
      %1946 = vmatpush.xpose.msra.mxu0 0.0
      %1947 = vmatpush.xpose.msra.mxu0 0.0
      %1948 = vmatpush.xpose.msra.mxu0 0.0
      %1949 = vmatpush.xpose.msra.mxu0 0.0
      %1950 = vmatpush.xpose.msra.mxu0 0.0
      %1951 = vmatpush.xpose.msra.mxu0 0.0
      %1952 = vmatpush.xpose.msra.mxu0 0.0
      %1953 = vmatpush.xpose.msra.mxu0 %v1937
      %1954 = vmatpush.xpose.msra.mxu0 %v1935
      %1955 = vmatmul.f32.gmra.mxu0 %v1931
      %v1956 = vpop.f32.mrf.mxu0
      %v1957 = vadd.f32 0.0, %v1956
      %1958 = vmatmul.f32.gmra.mxu0 %v1933
      %v1959 = vpop.f32.mrf.mxu0
      %v1960 = vadd.f32 0.0, %v1959
      %1961 = vdwg.mxu0
      %1962 = vrot.lane.b32.xlu0 %v587, 104
      %v1963 = vpop.permute.xlu0 %1962
      %1964 = vrot.lane.b32.xlu0 %v590, 104
      %v1965 = vpop.permute.xlu0 %1964
      %1966 = vrot.lane.b32.xlu0 %v587, 72
      %v1967 = vpop.permute.xlu0 %1966
      %1968 = vrot.lane.b32.xlu0 %v590, 72
      %v1969 = vpop.permute.xlu0 %1968
      %v1970 = vsel %vm604, %v1963, 0
      %v1972 = vsel %vm604, %v1965, 0
      %v1974 = vsel %vm604, %v1967, 0
      %v1976 = vsel %vm604, %v1969, 0
      %1978 = vmatpush.xpose.msra.mxu0 0.0
      %1979 = vmatpush.xpose.msra.mxu0 0.0
      %1980 = vmatpush.xpose.msra.mxu0 0.0
      %1981 = vmatpush.xpose.msra.mxu0 0.0
      %1982 = vmatpush.xpose.msra.mxu0 0.0
      %1983 = vmatpush.xpose.msra.mxu0 0.0
      %1984 = vmatpush.xpose.msra.mxu0 0.0
      %1985 = vmatpush.xpose.msra.mxu0 0.0
      %1986 = vmatpush.xpose.msra.mxu0 0.0
      %1987 = vmatpush.xpose.msra.mxu0 0.0
      %1988 = vmatpush.xpose.msra.mxu0 0.0
      %1989 = vmatpush.xpose.msra.mxu0 0.0
      %1990 = vmatpush.xpose.msra.mxu0 0.0
      %1991 = vmatpush.xpose.msra.mxu0 0.0
      %1992 = vmatpush.xpose.msra.mxu0 %v1976
      %1993 = vmatpush.xpose.msra.mxu0 %v1974
      %1994 = vmatmul.f32.gmra.mxu0 %v1970
      %v1995 = vpop.f32.mrf.mxu0
      %v1996 = vadd.f32 0.0, %v1995
      %1997 = vmatmul.f32.gmra.mxu0 %v1972
      %v1998 = vpop.f32.mrf.mxu0
      %v1999 = vadd.f32 0.0, %v1998
      %2000 = vdwg.mxu0
      %2001 = vrot.lane.b32.xlu0 %v593, 104
      %v2002 = vpop.permute.xlu0 %2001
      %2003 = vrot.lane.b32.xlu0 %v596, 104
      %v2004 = vpop.permute.xlu0 %2003
      %2005 = vrot.lane.b32.xlu0 %v593, 72
      %v2006 = vpop.permute.xlu0 %2005
      %2007 = vrot.lane.b32.xlu0 %v596, 72
      %v2008 = vpop.permute.xlu0 %2007
      %v2009 = vsel %vm604, %v2002, 0
      %v2011 = vsel %vm604, %v2004, 0
      %v2013 = vsel %vm604, %v2006, 0
      %v2015 = vsel %vm604, %v2008, 0
      %2017 = vmatpush.xpose.msra.mxu0 0.0
      %2018 = vmatpush.xpose.msra.mxu0 0.0
      %2019 = vmatpush.xpose.msra.mxu0 0.0
      %2020 = vmatpush.xpose.msra.mxu0 0.0
      %2021 = vmatpush.xpose.msra.mxu0 0.0
      %2022 = vmatpush.xpose.msra.mxu0 0.0
      %2023 = vmatpush.xpose.msra.mxu0 0.0
      %2024 = vmatpush.xpose.msra.mxu0 0.0
      %2025 = vmatpush.xpose.msra.mxu0 0.0
      %2026 = vmatpush.xpose.msra.mxu0 0.0
      %2027 = vmatpush.xpose.msra.mxu0 0.0
      %2028 = vmatpush.xpose.msra.mxu0 0.0
      %2029 = vmatpush.xpose.msra.mxu0 0.0
      %2030 = vmatpush.xpose.msra.mxu0 0.0
      %2031 = vmatpush.xpose.msra.mxu0 %v2015
      %2032 = vmatpush.xpose.msra.mxu0 %v2013
      %2033 = vmatmul.f32.gmra.mxu0 %v2009
      %v2034 = vpop.f32.mrf.mxu0
      %v2035 = vadd.f32 0.0, %v2034
      %2036 = vmatmul.f32.gmra.mxu0 %v2011
      %v2037 = vpop.f32.mrf.mxu0
      %v2038 = vadd.f32 0.0, %v2037
      %2039 = vdwg.mxu0
      %s2040 = scalar_lea.vmem %s5, 192
      %v2041 = vld [vmem:[%s2040] sm:$0xff]
      %v2042 = vld [vmem:[%s2040 + $0x8] sm:$0xff]
      %v2043 = vld [vmem:[%s2040 + $0x10] sm:$0xff]
      %v2044 = vld [vmem:[%s2040 + $0x18] sm:$0xff]
      %v2045 = vld [vmem:[%s2040 + $0x20] sm:$0xff]
      %v2046 = vld [vmem:[%s2040 + $0x28] sm:$0xff]
      %v2047 = vld [vmem:[%s2040 + $0x30] sm:$0xff]
      %v2048 = vld [vmem:[%s2040 + $0x38] sm:$0xff]
      %v2049 = vadd.f32 %v1918, %v2041
      %v2050 = vadd.f32 %v1921, %v2042
      %v2051 = vadd.f32 %v1957, %v2043
      %v2052 = vadd.f32 %v1960, %v2044
      %v2053 = vadd.f32 %v1996, %v2045
      %v2054 = vadd.f32 %v1999, %v2046
      %v2055 = vadd.f32 %v2035, %v2047
      %v2056 = vadd.f32 %v2038, %v2048
      %v2057 = vsel %vm763, %v2049, -inf
      %2058 = vmax.xlane.f32.xlu0 %v2057
      %v2059 = vpop.xlane.xlu0 %2058
      %v2060 = vsel %vm763, %v2050, -inf
      %2061 = vmax.xlane.f32.xlu0 %v2060
      %v2062 = vpop.xlane.xlu0 %2061
      %v2063 = vsel %vm763, %v2051, -inf
      %2064 = vmax.xlane.f32.xlu0 %v2063
      %v2065 = vpop.xlane.xlu0 %2064
      %v2066 = vsel %vm763, %v2052, -inf
      %2067 = vmax.xlane.f32.xlu0 %v2066
      %v2068 = vpop.xlane.xlu0 %2067
      %v2069 = vsel %vm763, %v2053, -inf
      %2070 = vmax.xlane.f32.xlu0 %v2069
      %v2071 = vpop.xlane.xlu0 %2070
      %v2072 = vsel %vm763, %v2054, -inf
      %2073 = vmax.xlane.f32.xlu0 %v2072
      %v2074 = vpop.xlane.xlu0 %2073
      %v2075 = vsel %vm763, %v2055, -inf
      %2076 = vmax.xlane.f32.xlu0 %v2075
      %v2077 = vpop.xlane.xlu0 %2076
      %v2078 = vsel %vm763, %v2056, -inf
      %2079 = vmax.xlane.f32.xlu0 %v2078
      %v2080 = vpop.xlane.xlu0 %2079
      %v2081 = vsub.f32 %v2049, %v2059
      %v2082 = vsub.f32 %v2050, %v2062
      %v2083 = vsub.f32 %v2051, %v2065
      %v2084 = vsub.f32 %v2052, %v2068
      %v2085 = vsub.f32 %v2053, %v2071
      %v2086 = vsub.f32 %v2054, %v2074
      %v2087 = vsub.f32 %v2055, %v2077
      %v2088 = vsub.f32 %v2056, %v2080
      %v2089 = vmul.f32 %v2081, 1.442695
      %v2090 = vpow.pop %v2089
      %v2091 = vmul.f32 %v2082, 1.442695
      %v2092 = vpow.pop %v2091
      %v2093 = vmul.f32 %v2083, 1.442695
      %v2094 = vpow.pop %v2093
      %v2095 = vmul.f32 %v2084, 1.442695
      %v2096 = vpow.pop %v2095
      %v2097 = vmul.f32 %v2085, 1.442695
      %v2098 = vpow.pop %v2097
      %v2099 = vmul.f32 %v2086, 1.442695
      %v2100 = vpow.pop %v2099
      %v2101 = vmul.f32 %v2087, 1.442695
      %v2102 = vpow.pop %v2101
      %v2103 = vmul.f32 %v2088, 1.442695
      %v2104 = vpow.pop %v2103
      %v2105 = vsel %vm763, %v2090, 0.0
      %2106 = vadd.xlane.f32.xlu0 %v2105
      %v2107 = vpop.xlane.xlu0 %2106
      %v2108 = vsel %vm763, %v2092, 0.0
      %2109 = vadd.xlane.f32.xlu0 %v2108
      %v2110 = vpop.xlane.xlu0 %2109
      %v2111 = vsel %vm763, %v2094, 0.0
      %2112 = vadd.xlane.f32.xlu0 %v2111
      %v2113 = vpop.xlane.xlu0 %2112
      %v2114 = vsel %vm763, %v2096, 0.0
      %2115 = vadd.xlane.f32.xlu0 %v2114
      %v2116 = vpop.xlane.xlu0 %2115
      %v2117 = vsel %vm763, %v2098, 0.0
      %2118 = vadd.xlane.f32.xlu0 %v2117
      %v2119 = vpop.xlane.xlu0 %2118
      %v2120 = vsel %vm763, %v2100, 0.0
      %2121 = vadd.xlane.f32.xlu0 %v2120
      %v2122 = vpop.xlane.xlu0 %2121
      %v2123 = vsel %vm763, %v2102, 0.0
      %2124 = vadd.xlane.f32.xlu0 %v2123
      %v2125 = vpop.xlane.xlu0 %2124
      %v2126 = vsel %vm763, %v2104, 0.0
      %2127 = vadd.xlane.f32.xlu0 %v2126
      %v2128 = vpop.xlane.xlu0 %2127
      %v2129 = vrcp.pop %v2107
      %v2130 = vrcp.pop %v2110
      %v2131 = vrcp.pop %v2113
      %v2132 = vrcp.pop %v2116
      %v2133 = vrcp.pop %v2119
      %v2134 = vrcp.pop %v2122
      %v2135 = vrcp.pop %v2125
      %v2136 = vrcp.pop %v2128
      %v2137 = vmul.f32 %v2090, %v2129
      %v2138 = vmul.f32 %v2092, %v2130
      %v2139 = vmul.f32 %v2094, %v2131
      %v2140 = vmul.f32 %v2096, %v2132
      %v2141 = vmul.f32 %v2098, %v2133
      %v2142 = vmul.f32 %v2100, %v2134
      %v2143 = vmul.f32 %v2102, %v2135
      %v2144 = vmul.f32 %v2104, %v2136
      %2145 = vrot.lane.b32.xlu0 %v575, 40
      %v2146 = vpop.permute.xlu0 %2145
      %2147 = vrot.lane.b32.xlu0 %v578, 40
      %v2148 = vpop.permute.xlu0 %2147
      %v2152 = vsel %vm763, %v2137, 0
      %v2155 = vsel %vm763, %v2138, 0
      %2157 = vmatpush.msra.mxu0 0.0
      %2158 = vmatpush.msra.mxu0 0.0
      %2159 = vmatpush.msra.mxu0 0.0
      %2160 = vmatpush.msra.mxu0 0.0
      %2161 = vmatpush.msra.mxu0 0.0
      %2162 = vmatpush.msra.mxu0 0.0
      %2163 = vmatpush.msra.mxu0 0.0
      %2164 = vmatpush.msra.mxu0 0.0
      %2165 = vmatpush.msra.mxu0 0.0
      %2166 = vmatpush.msra.mxu0 0.0
      %2167 = vmatpush.msra.mxu0 0.0
      %2168 = vmatpush.msra.mxu0 0.0
      %2169 = vmatpush.msra.mxu0 0.0
      %2170 = vmatpush.msra.mxu0 0.0
      %2171 = vmatpush.msra.mxu0 %v2148
      %2172 = vmatpush.msra.mxu0 %v2146
      %2173 = vmatmul.f32.gmra.mxu0 %v2152
      %v2174 = vpop.f32.mrf.mxu0
      %v2175 = vadd.f32 0.0, %v2174
      %2176 = vmatmul.f32.gmra.mxu0 %v2155
      %v2177 = vpop.f32.mrf.mxu0
      %v2178 = vadd.f32 0.0, %v2177
      %2179 = vdwg.mxu0
      %2180 = vrot.lane.b32.xlu0 %v581, 40
      %v2181 = vpop.permute.xlu0 %2180
      %2182 = vrot.lane.b32.xlu0 %v584, 40
      %v2183 = vpop.permute.xlu0 %2182
      %v2187 = vsel %vm763, %v2139, 0
      %v2190 = vsel %vm763, %v2140, 0
      %2192 = vmatpush.msra.mxu0 0.0
      %2193 = vmatpush.msra.mxu0 0.0
      %2194 = vmatpush.msra.mxu0 0.0
      %2195 = vmatpush.msra.mxu0 0.0
      %2196 = vmatpush.msra.mxu0 0.0
      %2197 = vmatpush.msra.mxu0 0.0
      %2198 = vmatpush.msra.mxu0 0.0
      %2199 = vmatpush.msra.mxu0 0.0
      %2200 = vmatpush.msra.mxu0 0.0
      %2201 = vmatpush.msra.mxu0 0.0
      %2202 = vmatpush.msra.mxu0 0.0
      %2203 = vmatpush.msra.mxu0 0.0
      %2204 = vmatpush.msra.mxu0 0.0
      %2205 = vmatpush.msra.mxu0 0.0
      %2206 = vmatpush.msra.mxu0 %v2183
      %2207 = vmatpush.msra.mxu0 %v2181
      %2208 = vmatmul.f32.gmra.mxu0 %v2187
      %v2209 = vpop.f32.mrf.mxu0
      %v2210 = vadd.f32 0.0, %v2209
      %2211 = vmatmul.f32.gmra.mxu0 %v2190
      %v2212 = vpop.f32.mrf.mxu0
      %v2213 = vadd.f32 0.0, %v2212
      %2214 = vdwg.mxu0
      %2215 = vrot.lane.b32.xlu0 %v587, 40
      %v2216 = vpop.permute.xlu0 %2215
      %2217 = vrot.lane.b32.xlu0 %v590, 40
      %v2218 = vpop.permute.xlu0 %2217
      %v2222 = vsel %vm763, %v2141, 0
      %v2225 = vsel %vm763, %v2142, 0
      %2227 = vmatpush.msra.mxu0 0.0
      %2228 = vmatpush.msra.mxu0 0.0
      %2229 = vmatpush.msra.mxu0 0.0
      %2230 = vmatpush.msra.mxu0 0.0
      %2231 = vmatpush.msra.mxu0 0.0
      %2232 = vmatpush.msra.mxu0 0.0
      %2233 = vmatpush.msra.mxu0 0.0
      %2234 = vmatpush.msra.mxu0 0.0
      %2235 = vmatpush.msra.mxu0 0.0
      %2236 = vmatpush.msra.mxu0 0.0
      %2237 = vmatpush.msra.mxu0 0.0
      %2238 = vmatpush.msra.mxu0 0.0
      %2239 = vmatpush.msra.mxu0 0.0
      %2240 = vmatpush.msra.mxu0 0.0
      %2241 = vmatpush.msra.mxu0 %v2218
      %2242 = vmatpush.msra.mxu0 %v2216
      %2243 = vmatmul.f32.gmra.mxu0 %v2222
      %v2244 = vpop.f32.mrf.mxu0
      %v2245 = vadd.f32 0.0, %v2244
      %2246 = vmatmul.f32.gmra.mxu0 %v2225
      %v2247 = vpop.f32.mrf.mxu0
      %v2248 = vadd.f32 0.0, %v2247
      %2249 = vdwg.mxu0
      %2250 = vrot.lane.b32.xlu0 %v593, 40
      %v2251 = vpop.permute.xlu0 %2250
      %2252 = vrot.lane.b32.xlu0 %v596, 40
      %v2253 = vpop.permute.xlu0 %2252
      %v2257 = vsel %vm763, %v2143, 0
      %v2260 = vsel %vm763, %v2144, 0
      %2262 = vmatpush.msra.mxu0 0.0
      %2263 = vmatpush.msra.mxu0 0.0
      %2264 = vmatpush.msra.mxu0 0.0
      %2265 = vmatpush.msra.mxu0 0.0
      %2266 = vmatpush.msra.mxu0 0.0
      %2267 = vmatpush.msra.mxu0 0.0
      %2268 = vmatpush.msra.mxu0 0.0
      %2269 = vmatpush.msra.mxu0 0.0
      %2270 = vmatpush.msra.mxu0 0.0
      %2271 = vmatpush.msra.mxu0 0.0
      %2272 = vmatpush.msra.mxu0 0.0
      %2273 = vmatpush.msra.mxu0 0.0
      %2274 = vmatpush.msra.mxu0 0.0
      %2275 = vmatpush.msra.mxu0 0.0
      %2276 = vmatpush.msra.mxu0 %v2253
      %2277 = vmatpush.msra.mxu0 %v2251
      %2278 = vmatmul.f32.gmra.mxu0 %v2257
      %v2279 = vpop.f32.mrf.mxu0
      %v2280 = vadd.f32 0.0, %v2279
      %2281 = vmatmul.f32.gmra.mxu0 %v2260
      %v2282 = vpop.f32.mrf.mxu0
      %v2283 = vadd.f32 0.0, %v2282
      %2284 = vdwg.mxu0
      %2293 = vrot.lane.b32.xlu0 %v2175, 24
      %v2294 = vpop.permute.xlu0 %2293
      %2295 = vrot.lane.b32.xlu0 %v2178, 24
      %v2296 = vpop.permute.xlu0 %2295
      %2297 = vrot.lane.b32.xlu0 %v2210, 24
      %v2298 = vpop.permute.xlu0 %2297
      %2299 = vrot.lane.b32.xlu0 %v2213, 24
      %v2300 = vpop.permute.xlu0 %2299
      %2301 = vrot.lane.b32.xlu0 %v2245, 24
      %v2302 = vpop.permute.xlu0 %2301
      %2303 = vrot.lane.b32.xlu0 %v2248, 24
      %v2304 = vpop.permute.xlu0 %2303
      %2305 = vrot.lane.b32.xlu0 %v2280, 24
      %v2306 = vpop.permute.xlu0 %2305
      %2307 = vrot.lane.b32.xlu0 %v2283, 24
      %v2308 = vpop.permute.xlu0 %2307
      %vm2317 = vcmask 261312
      %2318 = vst.msk [vmem:[#allocation2] sm:$0xff] %vm2317, %v2294
      %2319 = vst.msk [vmem:[#allocation2 + $0x8] sm:$0xff] %vm2317, %v2296
      %2320 = vst.msk [vmem:[#allocation2 + $0x10] sm:$0xff] %vm2317, %v2298
      %2321 = vst.msk [vmem:[#allocation2 + $0x18] sm:$0xff] %vm2317, %v2300
      %2322 = vst.msk [vmem:[#allocation2 + $0x20] sm:$0xff] %vm2317, %v2302
      %2323 = vst.msk [vmem:[#allocation2 + $0x28] sm:$0xff] %vm2317, %v2304
      %2324 = vst.msk [vmem:[#allocation2 + $0x30] sm:$0xff] %vm2317, %v2306
      %2325 = vst.msk [vmem:[#allocation2 + $0x38] sm:$0xff] %vm2317, %v2308
      %v2326 = vld [vmem:[#allocation2] sm:$0xff]
      %v2327 = vld [vmem:[#allocation2 + $0x8] sm:$0xff]
      %v2328 = vld [vmem:[#allocation2 + $0x10] sm:$0xff]
      %v2329 = vld [vmem:[#allocation2 + $0x18] sm:$0xff]
      %v2330 = vld [vmem:[#allocation2 + $0x20] sm:$0xff]
      %v2331 = vld [vmem:[#allocation2 + $0x28] sm:$0xff]
      %v2332 = vld [vmem:[#allocation2 + $0x30] sm:$0xff]
      %v2333 = vld [vmem:[#allocation2 + $0x38] sm:$0xff]
      %v2334 = vld [vmem:[%s6] sm:$0xff]
      %v2335 = vld [vmem:[%s6 + $0x8] sm:$0xff]
      %v2336 = vld [vmem:[%s6 + $0x10] sm:$0xff]
      %v2337 = vld [vmem:[%s6 + $0x18] sm:$0xff]
      %v2338 = vld [vmem:[%s7] sm:$0x1]
      %v2340 = vperm.slane %v2338, 0
      %v2343 = vsel %vm317, %v2326, 0
      %v2346 = vsel %vm317, %v2327, 0
      %v2349 = vsel %vm317, %v2328, 0
      %v2352 = vsel %vm317, %v2329, 0
      %v2355 = vsel %vm317, %v2330, 0
      %v2358 = vsel %vm317, %v2331, 0
      %v2361 = vsel %vm317, %v2332, 0
      %v2364 = vsel %vm317, %v2333, 0
      %2366 = vmatpush.msra.mxu0 0.0
      %2367 = vmatpush.msra.mxu0 0.0
      %2368 = vmatpush.msra.mxu0 0.0
      %2369 = vmatpush.msra.mxu0 0.0
      %2370 = vmatpush.msra.mxu0 0.0
      %2371 = vmatpush.msra.mxu0 0.0
      %2372 = vmatpush.msra.mxu0 0.0
      %2373 = vmatpush.msra.mxu0 0.0
      %2374 = vmatpush.msra.mxu0 0.0
      %2375 = vmatpush.msra.mxu0 0.0
      %2376 = vmatpush.msra.mxu0 0.0
      %2377 = vmatpush.msra.mxu0 0.0
      %2378 = vmatpush.msra.mxu0 %v2337
      %2379 = vmatpush.msra.mxu0 %v2336
      %2380 = vmatpush.msra.mxu0 %v2335
      %2381 = vmatpush.msra.mxu0 %v2334
      %2382 = vmatmul.f32.gmra.mxu0 %v2343
      %v2383 = vpop.f32.mrf.mxu0
      %v2384 = vadd.f32 %v2340, %v2383
      %2385 = vmatmul.f32.gmra.mxu0 %v2346
      %v2386 = vpop.f32.mrf.mxu0
      %v2387 = vadd.f32 %v2340, %v2386
      %2388 = vmatmul.f32.gmra.mxu0 %v2349
      %v2389 = vpop.f32.mrf.mxu0
      %v2390 = vadd.f32 %v2340, %v2389
      %2391 = vmatmul.f32.gmra.mxu0 %v2352
      %v2392 = vpop.f32.mrf.mxu0
      %v2393 = vadd.f32 %v2340, %v2392
      %2394 = vmatmul.f32.gmra.mxu0 %v2355
      %v2395 = vpop.f32.mrf.mxu0
      %v2396 = vadd.f32 %v2340, %v2395
      %2397 = vmatmul.f32.gmra.mxu0 %v2358
      %v2398 = vpop.f32.mrf.mxu0
      %v2399 = vadd.f32 %v2340, %v2398
      %2400 = vmatmul.f32.gmra.mxu0 %v2361
      %v2401 = vpop.f32.mrf.mxu0
      %v2402 = vadd.f32 %v2340, %v2401
      %2403 = vmatmul.f32.gmra.mxu0 %v2364
      %v2404 = vpop.f32.mrf.mxu0
      %v2405 = vadd.f32 %v2340, %v2404
      %2406 = vdwg.mxu0
      %2407 = vst.msk [vmem:[%s307] sm:$0xff] %vm317, %v2384
      %2408 = vst.msk [vmem:[%s307 + $0x8] sm:$0xff] %vm317, %v2387
      %2409 = vst.msk [vmem:[%s307 + $0x10] sm:$0xff] %vm317, %v2390
      %2410 = vst.msk [vmem:[%s307 + $0x18] sm:$0xff] %vm317, %v2393
      %2411 = vst.msk [vmem:[%s307 + $0x20] sm:$0xff] %vm317, %v2396
      %2412 = vst.msk [vmem:[%s307 + $0x28] sm:$0xff] %vm317, %v2399
      %2413 = vst.msk [vmem:[%s307 + $0x30] sm:$0xff] %vm317, %v2402
      %2414 = vst.msk [vmem:[%s307 + $0x38] sm:$0xff] %vm317, %v2405
      %s2415 = smul.u32 8, %s19
      %p2416 = scmp.lt.s32.totalorder %s2415, 15
      %s2417 = scalar_select %p2416, %s2415, 15
      %s2418 = smul.addr %s2417, 8
      %s2419 = scalar_lea.vmem %s8, %s2418
      // Predicated region
      $region53: #{_lambda_.1} parent=51 // pred_check
        %p2420 = pneg %p210
      $region54: #{_lambda_.1} parent=51 // pred_check_branch
        %2422 = sbr.rel (%p2420) target = $region56
      $region55: #{_lambda_.1} parent=51 // pred_region
        %s2423 = smul.u32 8, %s19
      $region56: #{_lambda_.1} parent=51 // pred_fallthru
        _
    $region52: #{_lambda_.1} parent=5 // pred_fallthru
      _
    %p2424 = scmp.le.s32.totalorder 2, %s14
    // Predicated region
    $region57: #{_lambda_.1} parent=5 // pred_check
      %p2425 = pneg %p2424
    $region58: #{_lambda_.1} parent=5 // pred_check_branch
      %2427 = sbr.rel (%p2425) target = $region60
    $region59: #{_lambda_.1} parent=5 // pred_region
      %s2428 = ssub.s32 %s14, 2
      // Predicated region
      $region61: #{_lambda_.1} parent=59 // pred_check
        %p2429 = pneg %p216
      $region62: #{_lambda_.1} parent=59 // pred_check_branch
        %2431 = sbr.rel (%p2429) target = $region64
      $region63: #{_lambda_.1} parent=59 // pred_region
        %s2432 = smul.u32 8, %s20
        %p2433 = scmp.lt.s32.totalorder %s2432, 15
        %s2434 = scalar_select %p2433, %s2432, 15
        %s2435 = smul.addr %s2434, 8
        %s2436 = scalar_lea.vmem %s8, %s2435
      $region64: #{_lambda_.1} parent=59 // pred_fallthru
        _
    $region60: #{_lambda_.1} parent=5 // pred_fallthru
      _
  $region6: #{_lambda_.1} parent=0 // loop_footer
    %s18 = sadd.s32 1, %s14
  $region7: #{_lambda_.1} parent=0 // loop_footer_branch
    %13 = sbr.rel target = $region3
  $region8: #{_lambda_.1} parent=0 // loop_exit
    _

</llo_original>
